<compile_context>
chip_gen: v7x
topology: tpu7x:2x2x1
jax: 0.10.0
libtpu: 0.0.40
codegen_flags: <defaults>
</compile_context>

<pallas_src>
import functools

import jax
import jax.numpy as jnp
from jax.experimental import pallas as pl
from jax.experimental.pallas import tpu as pltpu


def _textcnn_conv_pool_kernel(x_ref, w_ref, b_ref, out_ref, *,
                              n_time_tiles, t_out, k_size, l_out):
    """Fused Conv1d (im2col matmul) + bias + ReLU + streaming global max pool.

    x_ref:   (B_blk, L_pad, C_in)  bf16 embedded tokens (time axis zero-padded)
    w_ref:   (K*C_in, C_out)       bf16 conv weight (im2col-folded)
    b_ref:   (1, C_out)            f32 conv bias
    out_ref: (B_blk, C_out)        f32 globally max-pooled ReLU(conv) activations
    """
    b_blk = x_ref.shape[0]
    c_in = x_ref.shape[2]
    c_out = w_ref.shape[1]
    t_in = t_out + k_size - 1

    w = w_ref[...]        # (K*C_in, C_out) bf16, resident across time tiles
    bias = b_ref[...]     # (1, C_out) f32

    # ReLU output is >= 0, so 0 is a valid identity for the running max.
    running_max = jnp.zeros((b_blk, c_out), dtype=jnp.float32)

    for t in range(n_time_tiles):  # static, small trip count -> fully unrolled
        # Static time window needed for this tile of T output positions.
        xt = x_ref[:, t * t_out: t * t_out + t_in, :]            # (B_blk, T_in, C_in) bf16

        # im2col: concat the K shifted views along the contraction axis -> depth K*C_in.
        patches = jnp.concatenate(
            [xt[:, k:k + t_out, :] for k in range(k_size)], axis=-1)   # (B_blk, T, K*C_in)
        patches = patches.reshape(b_blk * t_out, k_size * c_in)

        # One deep MXU matmul, f32 accumulation.
        acc = jnp.dot(patches, w, preferred_element_type=jnp.float32)  # (B_blk*T, C_out)
        acc = jnp.maximum(acc + bias, 0.0)                             # bias + ReLU (f32 VPU)
        acc = acc.reshape(b_blk, t_out, c_out)

        # Mask padded (invalid) output positions of the last tile (ReLU >= 0, so 0 is safe).
        if (t + 1) * t_out > l_out:
            row = jax.lax.broadcasted_iota(jnp.int32, (1, t_out, 1), 1)
            acc = jnp.where(t * t_out + row < l_out, acc, 0.0)

        running_max = jnp.maximum(running_max, jnp.max(acc, axis=1))   # (B_blk, C_out)

    out_ref[...] = running_max


def textcnn_forward(token_ids, emb_table, w_conv, b_conv, w_fc, b_fc,
                    *, b_blk=8, t_out=16):
    """token_ids: (B, L) int32. Returns logits (B, n_classes) float32."""
    B, L = token_ids.shape
    C_out, C_in, K = w_conv.shape
    NC = w_fc.shape[0]
    L_out = L - K + 1

    # Embedding gather (glue) in plain JAX; cast to bf16 before it hits HBM again.
    x_emb = emb_table.astype(jnp.bfloat16)[token_ids]              # (B, L, C_in) bf16

    # Pad batch to a multiple of the batch block.
    b_blk = min(b_blk, B)
    n_b = (B + b_blk - 1) // b_blk
    B_pad = n_b * b_blk
    assert b_blk % 8 == 0 or b_blk == B_pad, "batch block must be 8-aligned or the full batch"
    if B_pad != B:
        x_emb = jnp.pad(x_emb, ((0, B_pad - B), (0, 0), (0, 0)))

    # Pad time so every time tile's input window is in-bounds (masked in-kernel).
    n_t = (L_out + t_out - 1) // t_out
    L_need = n_t * t_out + K - 1
    if L_need != L:
        x_emb = jnp.pad(x_emb, ((0, 0), (0, L_need - L), (0, 0)))
    L_pad = L_need

    # im2col-folded conv weight: (C_out, C_in, K) -> (K, C_in, C_out) -> (K*C_in, C_out).
    w_mat = jnp.transpose(w_conv, (2, 1, 0)).reshape(K * C_in, C_out).astype(jnp.bfloat16)
    b_conv_2d = b_conv.reshape(1, C_out).astype(jnp.float32)

    kernel = functools.partial(
        _textcnn_conv_pool_kernel,
        n_time_tiles=n_t, t_out=t_out, k_size=K, l_out=L_out)

    cost = pl.CostEstimate(
        flops=2 * B_pad * n_t * t_out * K * C_in * C_out,
        transcendentals=0,
        bytes_accessed=(B_pad * L_pad * C_in * 2          # x_emb bf16
                        + K * C_in * C_out * 2            # conv weight bf16
                        + C_out * 4                       # bias f32
                        + B_pad * C_out * 4))             # pooled output f32

    pooled = pl.pallas_call(
        kernel,
        out_shape=jax.ShapeDtypeStruct((B_pad, C_out), jnp.float32),
        grid=(B_pad // b_blk,),
        in_specs=[
            pl.BlockSpec((b_blk, L_pad, C_in), lambda i: (i, 0, 0)),
            pl.BlockSpec((K * C_in, C_out), lambda i: (0, 0)),
            pl.BlockSpec((1, C_out), lambda i: (0, 0)),
        ],
        out_specs=pl.BlockSpec((b_blk, C_out), lambda i: (i, 0)),
        compiler_params=pltpu.CompilerParams(
            dimension_semantics=("parallel",),        # v7x: 2 TCs split the batch blocks
            vmem_limit_bytes=32 * 1024 * 1024,        # tiles are far below this on all gens
        ),
        cost_estimate=cost,
    )(x_emb, w_mat, b_conv_2d)

    pooled = pooled[:B]                                            # drop batch padding

    # TODO(synk): F.dropout(x, 0.8) runs with training=True in the torch module (stochastic
    # even at eval); applied as identity here (inference semantics).

    # Tiny FC (256 -> 10): lane-sparse output, keep it in plain XLA instead of the kernel.
    logits = pooled @ w_fc.T.astype(jnp.float32) + b_fc.astype(jnp.float32)
    return logits


if __name__ == "__main__":
    # Small shapes consistent with the module: vocab=5000, emb=64, conv out=256, k=5, classes=10.
    # seq_len=36 -> conv length 32, globally max-pooled (analog of the real L=600 / pool 596).
    VOCAB, EMB, C_OUT, KSIZE, NCLS = 5000, 64, 256, 5, 10
    B, L = 16, 36

    key = jax.random.PRNGKey(0)
    k_ids, k_emb, k_wc, k_bc, k_wf, k_bf = jax.random.split(key, 6)

    token_ids = jax.random.randint(k_ids, (B, L), 0, VOCAB, dtype=jnp.int32)
    emb_table = jax.random.normal(k_emb, (VOCAB, EMB), dtype=jnp.float32) * 0.1
    w_conv = jax.random.normal(k_wc, (C_OUT, EMB, KSIZE), dtype=jnp.float32) * 0.05
    b_conv = jax.random.normal(k_bc, (C_OUT,), dtype=jnp.float32) * 0.05
    w_fc = jax.random.normal(k_wf, (NCLS, C_OUT), dtype=jnp.float32) * 0.05
    b_fc = jax.random.normal(k_bf, (NCLS,), dtype=jnp.float32) * 0.05

    logits = textcnn_forward(token_ids, emb_table, w_conv, b_conv, w_fc, b_fc)
    logits = jax.block_until_ready(logits)

    # Pure-JAX f32 reference.
    x_f32 = emb_table[token_ids]                                     # (B, L, EMB)
    conv_ref = jax.lax.conv_general_dilated(
        jnp.transpose(x_f32, (0, 2, 1)), w_conv, (1,), "VALID",
        dimension_numbers=("NCH", "OIH", "NCH"))                     # (B, C_OUT, L_out)
    conv_ref = jnp.maximum(conv_ref + b_conv[None, :, None], 0.0)
    pooled_ref = jnp.max(conv_ref, axis=-1)                          # (B, C_OUT)
    logits_ref = pooled_ref @ w_fc.T + b_fc

    assert logits.shape == (B, NCLS)
    # bf16 matmul operands vs f32 reference -> loosened tolerance.
    assert jnp.allclose(logits, logits_ref, atol=2e-2, rtol=2e-2), (
        float(jnp.max(jnp.abs(logits - logits_ref))))
    print("KERNEL_OK")
</pallas_src>

<mosaic_0001>
module attributes {stable_mosaic.version = 11 : i64} {
  func.func @_textcnn_conv_pool_kernel(%arg0: i32, %arg1: memref<8x36x64xbf16, #tpu.memory_space<vmem>>, %arg2: memref<320x256xbf16, #tpu.memory_space<vmem>>, %arg3: memref<1x256xf32, #tpu.memory_space<vmem>>, %arg4: memref<8x256xf32, #tpu.memory_space<vmem>>) attributes {dimension_semantics = [#tpu.dimension_semantics<parallel>], iteration_bounds = array<i64: 2>, scalar_prefetch = 0 : i64, scratch_operands = 0 : i64, tpu.core_type = #tpu.core_type<tc>, window_params = [{transform_indices = @transform_0, window_bounds = array<i64: 8, 36, 64>}, {pipeline_mode = #tpu.pipeline_mode<synchronous>, transform_indices = @transform_1, window_bounds = array<i64: 320, 256>}, {pipeline_mode = #tpu.pipeline_mode<synchronous>, transform_indices = @transform_2, window_bounds = array<i64: 1, 256>}, {transform_indices = @transform_3, window_bounds = array<i64: 8, 256>}]} {
    %c0 = arith.constant 0 : index
    %c0_0 = arith.constant 0 : index
    %0 = vector.load %arg2[%c0, %c0_0] : memref<320x256xbf16, #tpu.memory_space<vmem>>, vector<320x256xbf16>
    %c0_1 = arith.constant 0 : index
    %c0_2 = arith.constant 0 : index
    %1 = vector.load %arg3[%c0_1, %c0_2] : memref<1x256xf32, #tpu.memory_space<vmem>>, vector<1x256xf32>
    %cst = arith.constant 0.000000e+00 : f32
    %2 = vector.broadcast %cst : f32 to vector<8x256xf32>
    %c0_3 = arith.constant 0 : index
    %c0_4 = arith.constant 0 : index
    %c0_5 = arith.constant 0 : index
    %3 = vector.load %arg1[%c0_3, %c0_4, %c0_5] : memref<8x36x64xbf16, #tpu.memory_space<vmem>>, vector<8x20x64xbf16>
    %4 = vector.extract_strided_slice %3 {offsets = [0, 0, 0], sizes = [8, 16, 64], strides = [1, 1, 1]} : vector<8x20x64xbf16> to vector<8x16x64xbf16>
    %5 = vector.extract_strided_slice %3 {offsets = [0, 1, 0], sizes = [8, 16, 64], strides = [1, 1, 1]} : vector<8x20x64xbf16> to vector<8x16x64xbf16>
    %6 = vector.extract_strided_slice %3 {offsets = [0, 2, 0], sizes = [8, 16, 64], strides = [1, 1, 1]} : vector<8x20x64xbf16> to vector<8x16x64xbf16>
    %7 = vector.extract_strided_slice %3 {offsets = [0, 3, 0], sizes = [8, 16, 64], strides = [1, 1, 1]} : vector<8x20x64xbf16> to vector<8x16x64xbf16>
    %8 = vector.extract_strided_slice %3 {offsets = [0, 4, 0], sizes = [8, 16, 64], strides = [1, 1, 1]} : vector<8x20x64xbf16> to vector<8x16x64xbf16>
    %9 = tpu.concatenate %4, %5, %6, %7, %8 in 2 : vector<8x16x64xbf16>, vector<8x16x64xbf16>, vector<8x16x64xbf16>, vector<8x16x64xbf16>, vector<8x16x64xbf16> -> vector<8x16x320xbf16>
    %10 = vector.shape_cast %9 : vector<8x16x320xbf16> to vector<128x320xbf16>
    %cst_6 = arith.constant dense<0.000000e+00> : vector<128x256xf32>
    %11 = tpu.matmul %10, %0, %cst_6 {dimension_numbers = #tpu.dot_dimension_numbers<[1], [0], [0], [1], [0, 0, 1, 1], [], []>} : vector<128x320xbf16>, vector<320x256xbf16>, vector<128x256xf32> -> vector<128x256xf32>
    %12 = vector.broadcast %1 : vector<1x256xf32> to vector<128x256xf32>
    %13 = arith.addf %11, %12 : vector<128x256xf32>
    %cst_7 = arith.constant 0.000000e+00 : f32
    %14 = vector.broadcast %cst_7 : f32 to vector<128x256xf32>
    %15 = arith.maximumf %13, %14 : vector<128x256xf32>
    %16 = vector.shape_cast %15 : vector<128x256xf32> to vector<8x16x256xf32>
    %cst_8 = arith.constant dense<0xFF800000> : vector<8x256xf32>
    %17 = vector.multi_reduction <maximumf>, %16, %cst_8 [1] : vector<8x16x256xf32> to vector<8x256xf32>
    %18 = arith.maximumf %2, %17 : vector<8x256xf32>
    %c0_9 = arith.constant 0 : index
    %c16 = arith.constant 16 : index
    %c0_10 = arith.constant 0 : index
    %19 = vector.load %arg1[%c0_9, %c16, %c0_10] : memref<8x36x64xbf16, #tpu.memory_space<vmem>>, vector<8x20x64xbf16>
    %20 = vector.extract_strided_slice %19 {offsets = [0, 0, 0], sizes = [8, 16, 64], strides = [1, 1, 1]} : vector<8x20x64xbf16> to vector<8x16x64xbf16>
    %21 = vector.extract_strided_slice %19 {offsets = [0, 1, 0], sizes = [8, 16, 64], strides = [1, 1, 1]} : vector<8x20x64xbf16> to vector<8x16x64xbf16>
    %22 = vector.extract_strided_slice %19 {offsets = [0, 2, 0], sizes = [8, 16, 64], strides = [1, 1, 1]} : vector<8x20x64xbf16> to vector<8x16x64xbf16>
    %23 = vector.extract_strided_slice %19 {offsets = [0, 3, 0], sizes = [8, 16, 64], strides = [1, 1, 1]} : vector<8x20x64xbf16> to vector<8x16x64xbf16>
    %24 = vector.extract_strided_slice %19 {offsets = [0, 4, 0], sizes = [8, 16, 64], strides = [1, 1, 1]} : vector<8x20x64xbf16> to vector<8x16x64xbf16>
    %25 = tpu.concatenate %20, %21, %22, %23, %24 in 2 : vector<8x16x64xbf16>, vector<8x16x64xbf16>, vector<8x16x64xbf16>, vector<8x16x64xbf16>, vector<8x16x64xbf16> -> vector<8x16x320xbf16>
    %26 = vector.shape_cast %25 : vector<8x16x320xbf16> to vector<128x320xbf16>
    %cst_11 = arith.constant dense<0.000000e+00> : vector<128x256xf32>
    %27 = tpu.matmul %26, %0, %cst_11 {dimension_numbers = #tpu.dot_dimension_numbers<[1], [0], [0], [1], [0, 0, 1, 1], [], []>} : vector<128x320xbf16>, vector<320x256xbf16>, vector<128x256xf32> -> vector<128x256xf32>
    %28 = vector.broadcast %1 : vector<1x256xf32> to vector<128x256xf32>
    %29 = arith.addf %27, %28 : vector<128x256xf32>
    %cst_12 = arith.constant 0.000000e+00 : f32
    %30 = vector.broadcast %cst_12 : f32 to vector<128x256xf32>
    %31 = arith.maximumf %29, %30 : vector<128x256xf32>
    %32 = vector.shape_cast %31 : vector<128x256xf32> to vector<8x16x256xf32>
    %cst_13 = arith.constant dense<0xFF800000> : vector<8x256xf32>
    %33 = vector.multi_reduction <maximumf>, %32, %cst_13 [1] : vector<8x16x256xf32> to vector<8x256xf32>
    %34 = arith.maximumf %18, %33 : vector<8x256xf32>
    %c0_14 = arith.constant 0 : index
    %c0_15 = arith.constant 0 : index
    %35 = vector.load %arg4[%c0_14, %c0_15] : memref<8x256xf32, #tpu.memory_space<vmem>>, vector<8x256xf32>
    tpu.vector_store %arg4[%c0_14, %c0_15], %34 {strides = array<i32>} : memref<8x256xf32, #tpu.memory_space<vmem>>, vector<8x256xf32>,
    return
  }
  func.func @transform_0(%arg0: i32) -> (i32, i32, i32) {
    %c0_i32 = arith.constant 0 : i32
    %c0_i32_0 = arith.constant 0 : i32
    %c0_i32_1 = arith.constant 0 : i32
    return %arg0, %c0_i32, %c0_i32_0 : i32, i32, i32
  }
  func.func @transform_1(%arg0: i32) -> (i32, i32) {
    %c0_i32 = arith.constant 0 : i32
    %c0_i32_0 = arith.constant 0 : i32
    %c0_i32_1 = arith.constant 0 : i32
    return %c0_i32, %c0_i32_0 : i32, i32
  }
  func.func @transform_2(%arg0: i32) -> (i32, i32) {
    %c0_i32 = arith.constant 0 : i32
    %c0_i32_0 = arith.constant 0 : i32
    %c0_i32_1 = arith.constant 0 : i32
    return %c0_i32, %c0_i32_0 : i32, i32
  }
  func.func @transform_3(%arg0: i32) -> (i32, i32) {
    %c0_i32 = arith.constant 0 : i32
    %c0_i32_0 = arith.constant 0 : i32
    return %arg0, %c0_i32 : i32, i32
  }
}

</mosaic_0001>

<llo_original>
// kernel: tpu_custom_call.1
$region0: #{tpu_custom_call.1}
  #allocation0 [shape = 'u32[]', space=smem, size = 0x4, offset = 0x4, fixed_abs, tag = 'smem constant byte address 0x4 - core index']
  #allocation1 [shape = 'u32[144,128]{1,0:T(1,128)}', space=vmem, size = 0x12000, scoped, tag = 'internal scratch']
  %s0 = inlined_call_operand.vmem [shape: bf16[16,36,64], index: 0, kind: input, shape index: {}]
  %s1 = inlined_call_operand.vmem [shape: bf16[320,256], index: 1, kind: input, shape index: {}]
  %s2 = inlined_call_operand.vmem [shape: f32[1,256], index: 2, kind: input, shape index: {}]
  %s3 = inlined_call_operand.hbm [shape: f32[16,256], index: 3, kind: output, shape index: {}]
  %s4 = sld [smem:[#allocation0]]
  $region45: #{tpu_custom_call.1} parent=0
    _
  %s6 = ssub.s32 1, %s4
  %s7 = scalar_select 0, %s6, %s4
  $region1: #{tpu_custom_call.1} parent=0
    #allocation2 [shape = 'u8[16384]{0}', space=vmem, size = 0x4000, scoped, tag = 'output window, operand 0']
    #allocation3 [shape = 's32[2]{0}', space=sflag, size = 0x8, scoped, tag = 'scoped memory for tpu_custom_call.1']
    %8 = vsyncpa [#allocation3], 0
    %s9 = scalar_lea.sflag [#allocation3], 1
    %10 = vsyncpa %s9, 0
    loop: start=0, step=1, limit=4
    $region2: #{tpu_custom_call.1} parent=1 // loop_pre_header
      _
    $region3: #{tpu_custom_call.1} parent=1 // loop_header
      %s12 = sphi 0, %s16
      %p13 = scmp.ge.s32.totalorder %s12, 4
      %s22 = sphi 0, %s24
      %s25 = sphi 0, %s22
      %s26 = sphi 0, %s25
      %s42 = sphi 0, %s26
      %s46 = sphi 0, %s46
      %s48 = sphi 0, %s46
      %s49 = sphi 0, %s48
      %s63 = sphi 0, %s49
      %s67 = sphi 0, %s67
      %s69 = sphi 0, %s67
      %s70 = sphi 0, %s69
      %s84 = sphi 0, %s70
      %s90 = sphi 0, %s92
      %s93 = sphi 0, %s90
      %s94 = sphi 0, %s93
      %s110 = sphi 0, %s94
    $region4: #{tpu_custom_call.1} parent=1 // loop_header_branch
      %15 = sbr.rel (%p13) target = $region8
    $region5: #{tpu_custom_call.1} parent=1 // loop_body
      %s17 = ssub.s32 %s12, 1
      %s18 = ssub.s32 %s12, 2
      %s19 = sadd.s32 %s12, 1
      %s20 = ssub.s32 %s12, %s19
      %p21 = scmp.eq.s32.totalorder %s20, 0
      %s23 = sadd.s32 %s22, 1
      %s24 = scalar_select %p21, %s22, %s23
      %p27 = pneg %p21
      %p28 = scmp.eq.s32.totalorder %s12, 1
      %p29 = por %p27, %p28
      %p30 = scmp.ne.s32.totalorder %s22, %s25
      %p31 = scmp.eq.s32.totalorder %s12, 0
      %p32 = por %p30, %p31
      %p33 = scmp.ne.s32.totalorder %s22, %s25
      %p34 = scmp.eq.s32.totalorder %s17, 1
      %p35 = por %p33, %p34
      %p36 = scmp.ne.s32.totalorder %s25, %s26
      %p37 = scmp.eq.s32.totalorder %s17, 0
      %p38 = por %p36, %p37
      %p39 = scmp.ne.s32.totalorder %s25, %s26
      %p40 = scmp.eq.s32.totalorder %s18, 1
      %p41 = por %p39, %p40
      %p43 = scmp.ne.s32.totalorder %s26, %s42
      %p44 = scmp.eq.s32.totalorder %s18, 0
      %p45 = por %p43, %p44
      %s47 = sadd.s32 %s46, 1
      %p50 = scmp.eq.s32.totalorder %s12, 1
      %p51 = scmp.ne.s32.totalorder %s46, %s48
      %p52 = scmp.eq.s32.totalorder %s12, 0
      %p53 = por %p51, %p52
      %p54 = scmp.ne.s32.totalorder %s46, %s48
      %p55 = scmp.eq.s32.totalorder %s17, 1
      %p56 = por %p54, %p55
      %p57 = scmp.ne.s32.totalorder %s48, %s49
      %p58 = scmp.eq.s32.totalorder %s17, 0
      %p59 = por %p57, %p58
      %p60 = scmp.ne.s32.totalorder %s48, %s49
      %p61 = scmp.eq.s32.totalorder %s18, 1
      %p62 = por %p60, %p61
      %p64 = scmp.ne.s32.totalorder %s49, %s63
      %p65 = scmp.eq.s32.totalorder %s18, 0
      %p66 = por %p64, %p65
      %s68 = sadd.s32 %s67, 1
      %p71 = scmp.eq.s32.totalorder %s12, 1
      %p72 = scmp.ne.s32.totalorder %s67, %s69
      %p73 = scmp.eq.s32.totalorder %s12, 0
      %p74 = por %p72, %p73
      %p75 = scmp.ne.s32.totalorder %s67, %s69
      %p76 = scmp.eq.s32.totalorder %s17, 1
      %p77 = por %p75, %p76
      %p78 = scmp.ne.s32.totalorder %s69, %s70
      %p79 = scmp.eq.s32.totalorder %s17, 0
      %p80 = por %p78, %p79
      %p81 = scmp.ne.s32.totalorder %s69, %s70
      %p82 = scmp.eq.s32.totalorder %s18, 1
      %p83 = por %p81, %p82
      %p85 = scmp.ne.s32.totalorder %s70, %s84
      %p86 = scmp.eq.s32.totalorder %s18, 0
      %p87 = por %p85, %p86
      %s88 = ssub.s32 %s12, %s19
      %p89 = scmp.eq.s32.totalorder %s88, 0
      %s91 = sadd.s32 %s90, 1
      %s92 = scalar_select %p89, %s90, %s91
      %p95 = pneg %p89
      %p96 = scmp.eq.s32.totalorder %s12, 1
      %p97 = por %p95, %p96
      %p98 = scmp.ne.s32.totalorder %s90, %s93
      %p99 = scmp.eq.s32.totalorder %s12, 0
      %p100 = por %p98, %p99
      %p101 = scmp.ne.s32.totalorder %s90, %s93
      %p102 = scmp.eq.s32.totalorder %s17, 1
      %p103 = por %p101, %p102
      %p104 = scmp.ne.s32.totalorder %s93, %s94
      %p105 = scmp.eq.s32.totalorder %s17, 0
      %p106 = por %p104, %p105
      %p107 = scmp.ne.s32.totalorder %s93, %s94
      %p108 = scmp.eq.s32.totalorder %s18, 1
      %p109 = por %p107, %p108
      %p111 = scmp.ne.s32.totalorder %s94, %s110
      %p112 = scmp.eq.s32.totalorder %s18, 0
      %p113 = por %p111, %p112
      %p114 = scmp.le.s32.totalorder 1, %s12
      %p115 = scmp.lt.s32.totalorder %s12, 3
      %p116 = pnand %p114, %p115
      %p117 = pneg %p116
      // Predicated region
      $region9: #{tpu_custom_call.1} parent=5 // pred_check
        _
      $region10: #{tpu_custom_call.1} parent=5 // pred_check_branch
        %119 = sbr.rel (%p116) target = $region12
      $region11: #{tpu_custom_call.1} parent=5 // pred_region
        %s120 = ssub.s32 %s12, 1
        // Predicated region
        $region13: #{tpu_custom_call.1} parent=11 // pred_check
          %p121 = pneg %p59
        $region14: #{tpu_custom_call.1} parent=11 // pred_check_branch
          %123 = sbr.rel (%p121) target = $region16
        $region15: #{tpu_custom_call.1} parent=11 // pred_region
          _
        $region16: #{tpu_custom_call.1} parent=11 // pred_fallthru
          _
        // Predicated region
        $region17: #{tpu_custom_call.1} parent=11 // pred_check
          %p124 = pneg %p80
        $region18: #{tpu_custom_call.1} parent=11 // pred_check_branch
          %126 = sbr.rel (%p124) target = $region20
        $region19: #{tpu_custom_call.1} parent=11 // pred_region
          _
        $region20: #{tpu_custom_call.1} parent=11 // pred_fallthru
          _
      $region12: #{tpu_custom_call.1} parent=5 // pred_fallthru
        _
      %p127 = scmp.lt.s32.totalorder %s12, 2
      // Predicated region
      $region21: #{tpu_custom_call.1} parent=5 // pred_check
        %p128 = pneg %p127
      $region22: #{tpu_custom_call.1} parent=5 // pred_check_branch
        %130 = sbr.rel (%p128) target = $region24
      $region23: #{tpu_custom_call.1} parent=5 // pred_region
        // Predicated region
        $region25: #{tpu_custom_call.1} parent=23 // pred_check
          %p131 = pneg %p32
        $region26: #{tpu_custom_call.1} parent=23 // pred_check_branch
          %133 = sbr.rel (%p131) target = $region28
        $region27: #{tpu_custom_call.1} parent=23 // pred_region
          %s134 = smul.u32 8, %s12
          %p135 = scmp.lt.s32.totalorder %s134, 15
          %s136 = scalar_select %p135, %s134, 15
          %s137 = smul.addr %s136, 5
          %s138 = smul.addr %s137, 4
          %s139 = scalar_lea.vmem %s0, %s138
          %s140 = smul.u32 8, %s12
        $region28: #{tpu_custom_call.1} parent=23 // pred_fallthru
          _
      $region24: #{tpu_custom_call.1} parent=5 // pred_fallthru
        _
      %p141 = scmp.le.s32.totalorder 1, %s12
      %p142 = scmp.lt.s32.totalorder %s12, 3
      %p143 = pnand %p141, %p142
      %p144 = pneg %p143
      // Predicated region
      $region29: #{tpu_custom_call.1} parent=5 // pred_check
        _
      $region30: #{tpu_custom_call.1} parent=5 // pred_check_branch
        %146 = sbr.rel (%p143) target = $region32
      $region31: #{tpu_custom_call.1} parent=5 // pred_region
        %s147 = ssub.s32 %s12, 1
        %s148 = smul.u32 8, %s17
        %p149 = scmp.lt.s32.totalorder %s148, 15
        %s150 = scalar_select %p149, %s148, 15
        %s151 = smul.addr %s150, 5
        %s152 = smul.addr %s151, 4
        %s153 = scalar_lea.vmem %s0, %s152
        %p154 = pneg %p38
        %p155 = pneg %p35
        %p156 = pneg %p59
        %p157 = pneg %p56
        %p158 = pneg %p80
        %p159 = pneg %p77
        %p160 = pneg %p106
        %p161 = pneg %p103
        %s162 = sand.u32 %s93, 1
        %s163 = scalar_lea.sflag [#allocation3], %s162
        %s164 = sand.u32 %s93, 1
        %s165 = smul.addr %s164, 16
        %s166 = scalar_lea.vmem [#allocation2], %s165
        %s167 = smul.u32 8, %s17
        %p168 = scmp.lt.s32.totalorder %s167, 15
        %s169 = scalar_select %p168, %s167, 15
        %s170 = smul.addr %s169, 5
        %s171 = smul.addr %s170, 4
        %s172 = scalar_lea.vmem %s0, %s171
        %s173 = smul.u32 8, %s17
        %v175 = vld [vmem:[%s1] sm:$0xff]
        %v176 = vld [vmem:[%s1 + $0x8] sm:$0xff]
        %v177 = vld [vmem:[%s1 + $0x10] sm:$0xff]
        %v178 = vld [vmem:[%s1 + $0x18] sm:$0xff]
        %v179 = vld [vmem:[%s1 + $0x20] sm:$0xff]
        %v180 = vld [vmem:[%s1 + $0x28] sm:$0xff]
        %v181 = vld [vmem:[%s1 + $0x30] sm:$0xff]
        %v182 = vld [vmem:[%s1 + $0x38] sm:$0xff]
        %v183 = vld [vmem:[%s1 + $0x40] sm:$0xff]
        %v184 = vld [vmem:[%s1 + $0x48] sm:$0xff]
        %v185 = vld [vmem:[%s1 + $0x50] sm:$0xff]
        %v186 = vld [vmem:[%s1 + $0x58] sm:$0xff]
        %v187 = vld [vmem:[%s1 + $0x60] sm:$0xff]
        %v188 = vld [vmem:[%s1 + $0x68] sm:$0xff]
        %v189 = vld [vmem:[%s1 + $0x70] sm:$0xff]
        %v190 = vld [vmem:[%s1 + $0x78] sm:$0xff]
        %v191 = vld [vmem:[%s1 + $0x80] sm:$0xff]
        %v192 = vld [vmem:[%s1 + $0x88] sm:$0xff]
        %v193 = vld [vmem:[%s1 + $0x90] sm:$0xff]
        %v194 = vld [vmem:[%s1 + $0x98] sm:$0xff]
        %v195 = vld [vmem:[%s1 + $0xa0] sm:$0xff]
        %v196 = vld [vmem:[%s1 + $0xa8] sm:$0xff]
        %v197 = vld [vmem:[%s1 + $0xb0] sm:$0xff]
        %v198 = vld [vmem:[%s1 + $0xb8] sm:$0xff]
        %v199 = vld [vmem:[%s1 + $0xc0] sm:$0xff]
        %v200 = vld [vmem:[%s1 + $0xc8] sm:$0xff]
        %v201 = vld [vmem:[%s1 + $0xd0] sm:$0xff]
        %v202 = vld [vmem:[%s1 + $0xd8] sm:$0xff]
        %v203 = vld [vmem:[%s1 + $0xe0] sm:$0xff]
        %v204 = vld [vmem:[%s1 + $0xe8] sm:$0xff]
        %v205 = vld [vmem:[%s1 + $0xf0] sm:$0xff]
        %v206 = vld [vmem:[%s1 + $0xf8] sm:$0xff]
        %v207 = vld [vmem:[%s1 + $0x100] sm:$0xff]
        %v208 = vld [vmem:[%s1 + $0x108] sm:$0xff]
        %v209 = vld [vmem:[%s1 + $0x110] sm:$0xff]
        %v210 = vld [vmem:[%s1 + $0x118] sm:$0xff]
        %v211 = vld [vmem:[%s1 + $0x120] sm:$0xff]
        %v212 = vld [vmem:[%s1 + $0x128] sm:$0xff]
        %v213 = vld [vmem:[%s1 + $0x130] sm:$0xff]
        %v214 = vld [vmem:[%s1 + $0x138] sm:$0xff]
        %v215 = vld [vmem:[%s2] sm:$0x3]
        %v216 = vld [vmem:[%s172] sm:$0xf]
        %v217 = vld [vmem:[%s172 + $0x4] sm:$0xf]
        %v218 = vld [vmem:[%s172 + $0x8] sm:$0x3]
        %v219 = vld [vmem:[%s172 + $0x14] sm:$0xf]
        %v220 = vld [vmem:[%s172 + $0x18] sm:$0xf]
        %v221 = vld [vmem:[%s172 + $0x1c] sm:$0x3]
        %v222 = vld [vmem:[%s172 + $0x28] sm:$0xf]
        %v223 = vld [vmem:[%s172 + $0x2c] sm:$0xf]
        %v224 = vld [vmem:[%s172 + $0x30] sm:$0x3]
        %v225 = vld [vmem:[%s172 + $0x3c] sm:$0xf]
        %v226 = vld [vmem:[%s172 + $0x40] sm:$0xf]
        %v227 = vld [vmem:[%s172 + $0x44] sm:$0x3]
        %v228 = vld [vmem:[%s172 + $0x50] sm:$0xf]
        %v229 = vld [vmem:[%s172 + $0x54] sm:$0xf]
        %v230 = vld [vmem:[%s172 + $0x58] sm:$0x3]
        %v231 = vld [vmem:[%s172 + $0x64] sm:$0xf]
        %v232 = vld [vmem:[%s172 + $0x68] sm:$0xf]
        %v233 = vld [vmem:[%s172 + $0x6c] sm:$0x3]
        %v234 = vld [vmem:[%s172 + $0x78] sm:$0xf]
        %v235 = vld [vmem:[%s172 + $0x7c] sm:$0xf]
        %v236 = vld [vmem:[%s172 + $0x80] sm:$0x3]
        %v237 = vld [vmem:[%s172 + $0x8c] sm:$0xf]
        %v238 = vld [vmem:[%s172 + $0x90] sm:$0xf]
        %v239 = vld [vmem:[%s172 + $0x94] sm:$0x3]
        %v256 = vunpack.c.l.b16 %v216
        %v257 = vunpack.c.l.b16 %v217
        %v258 = vunpack.c.l.b16 %v219
        %v259 = vunpack.c.l.b16 %v220
        %v260 = vunpack.c.l.b16 %v222
        %v261 = vunpack.c.l.b16 %v223
        %v262 = vunpack.c.l.b16 %v225
        %v263 = vunpack.c.l.b16 %v226
        %v264 = vunpack.c.l.b16 %v228
        %v265 = vunpack.c.l.b16 %v229
        %v266 = vunpack.c.l.b16 %v231
        %v267 = vunpack.c.l.b16 %v232
        %v268 = vunpack.c.l.b16 %v234
        %v269 = vunpack.c.l.b16 %v235
        %v270 = vunpack.c.l.b16 %v237
        %v271 = vunpack.c.l.b16 %v238
        %v272 = vpack.c.b16 %v257, %v256
        %v273 = vpack.c.b16 %v259, %v258
        %v274 = vpack.c.b16 %v261, %v260
        %v275 = vpack.c.b16 %v263, %v262
        %v276 = vpack.c.b16 %v265, %v264
        %v277 = vpack.c.b16 %v267, %v266
        %v278 = vpack.c.b16 %v269, %v268
        %v279 = vpack.c.b16 %v271, %v270
        %v288 = vunpack.c.l.b16 %v218
        %v289 = vunpack.c.l.b16 %v221
        %v290 = vunpack.c.l.b16 %v224
        %v291 = vunpack.c.l.b16 %v227
        %v292 = vunpack.c.l.b16 %v230
        %v293 = vunpack.c.l.b16 %v233
        %v294 = vunpack.c.l.b16 %v236
        %v295 = vunpack.c.l.b16 %v239
        %v296 = vpack.c.b16 %v288, %v288
        %v297 = vpack.c.b16 %v289, %v289
        %v298 = vpack.c.b16 %v290, %v290
        %v299 = vpack.c.b16 %v291, %v291
        %v300 = vpack.c.b16 %v292, %v292
        %v301 = vpack.c.b16 %v293, %v293
        %v302 = vpack.c.b16 %v294, %v294
        %v303 = vpack.c.b16 %v295, %v295
        %vm304 = vsmask.f32 7424
        %v306 = vshrl.u32 %v272, 16
        %v308 = vshll.u32 %v272, 16
        %v310 = vrot.slane %v308, 1
        %v311 = vor.u32 %v306, %v310
        %v313 = vshll.u32 %v296, 16
        %v315 = vrot.slane %v313, 1
        %v316 = vsel %vm304, %v311, %v315
        %v318 = vshrl.u32 %v273, 16
        %v320 = vshll.u32 %v273, 16
        %v322 = vrot.slane %v320, 1
        %v323 = vor.u32 %v318, %v322
        %v325 = vshll.u32 %v297, 16
        %v327 = vrot.slane %v325, 1
        %v328 = vsel %vm304, %v323, %v327
        %v330 = vshrl.u32 %v274, 16
        %v332 = vshll.u32 %v274, 16
        %v334 = vrot.slane %v332, 1
        %v335 = vor.u32 %v330, %v334
        %v337 = vshll.u32 %v298, 16
        %v339 = vrot.slane %v337, 1
        %v340 = vsel %vm304, %v335, %v339
        %v342 = vshrl.u32 %v275, 16
        %v344 = vshll.u32 %v275, 16
        %v346 = vrot.slane %v344, 1
        %v347 = vor.u32 %v342, %v346
        %v349 = vshll.u32 %v299, 16
        %v351 = vrot.slane %v349, 1
        %v352 = vsel %vm304, %v347, %v351
        %v354 = vshrl.u32 %v276, 16
        %v356 = vshll.u32 %v276, 16
        %v358 = vrot.slane %v356, 1
        %v359 = vor.u32 %v354, %v358
        %v361 = vshll.u32 %v300, 16
        %v363 = vrot.slane %v361, 1
        %v364 = vsel %vm304, %v359, %v363
        %v366 = vshrl.u32 %v277, 16
        %v368 = vshll.u32 %v277, 16
        %v370 = vrot.slane %v368, 1
        %v371 = vor.u32 %v366, %v370
        %v373 = vshll.u32 %v301, 16
        %v375 = vrot.slane %v373, 1
        %v376 = vsel %vm304, %v371, %v375
        %v378 = vshrl.u32 %v278, 16
        %v380 = vshll.u32 %v278, 16
        %v382 = vrot.slane %v380, 1
        %v383 = vor.u32 %v378, %v382
        %v385 = vshll.u32 %v302, 16
        %v387 = vrot.slane %v385, 1
        %v388 = vsel %vm304, %v383, %v387
        %v390 = vshrl.u32 %v279, 16
        %v392 = vshll.u32 %v279, 16
        %v394 = vrot.slane %v392, 1
        %v395 = vor.u32 %v390, %v394
        %v397 = vshll.u32 %v303, 16
        %v399 = vrot.slane %v397, 1
        %v400 = vsel %vm304, %v395, %v399
        %401 = vrot.lane.b32.xlu0 %v316, 64
        %v402 = vpop.permute.xlu0 %401
        %403 = vrot.lane.b32.xlu0 %v328, 64
        %v404 = vpop.permute.xlu0 %403
        %405 = vrot.lane.b32.xlu0 %v340, 64
        %v406 = vpop.permute.xlu0 %405
        %407 = vrot.lane.b32.xlu0 %v352, 64
        %v408 = vpop.permute.xlu0 %407
        %409 = vrot.lane.b32.xlu0 %v364, 64
        %v410 = vpop.permute.xlu0 %409
        %411 = vrot.lane.b32.xlu0 %v376, 64
        %v412 = vpop.permute.xlu0 %411
        %413 = vrot.lane.b32.xlu0 %v388, 64
        %v414 = vpop.permute.xlu0 %413
        %415 = vrot.lane.b32.xlu0 %v400, 64
        %v416 = vpop.permute.xlu0 %415
        %vm417 = vcmask 1046528
        %v418 = vrot.slane %v272, 1
        %v419 = vrot.slane %v296, 1
        %v420 = vsel %vm417, %v418, %v419
        %v421 = vrot.slane %v273, 1
        %v422 = vrot.slane %v297, 1
        %v423 = vsel %vm417, %v421, %v422
        %v424 = vrot.slane %v274, 1
        %v425 = vrot.slane %v298, 1
        %v426 = vsel %vm417, %v424, %v425
        %v427 = vrot.slane %v275, 1
        %v428 = vrot.slane %v299, 1
        %v429 = vsel %vm417, %v427, %v428
        %v430 = vrot.slane %v276, 1
        %v431 = vrot.slane %v300, 1
        %v432 = vsel %vm417, %v430, %v431
        %v433 = vrot.slane %v277, 1
        %v434 = vrot.slane %v301, 1
        %v435 = vsel %vm417, %v433, %v434
        %v436 = vrot.slane %v278, 1
        %v437 = vrot.slane %v302, 1
        %v438 = vsel %vm417, %v436, %v437
        %v439 = vrot.slane %v279, 1
        %v440 = vrot.slane %v303, 1
        %v441 = vsel %vm417, %v439, %v440
        %vm442 = vsmask.f32 6400
        %v443 = vrot.slane %v306, 1
        %v444 = vrot.slane %v308, 2
        %v445 = vor.u32 %v443, %v444
        %v446 = vshrl.u32 %v296, 16
        %v448 = vrot.slane %v446, 1
        %v449 = vrot.slane %v313, 2
        %v450 = vor.u32 %v448, %v449
        %v451 = vsel %vm442, %v445, %v450
        %v452 = vrot.slane %v318, 1
        %v453 = vrot.slane %v320, 2
        %v454 = vor.u32 %v452, %v453
        %v455 = vshrl.u32 %v297, 16
        %v457 = vrot.slane %v455, 1
        %v458 = vrot.slane %v325, 2
        %v459 = vor.u32 %v457, %v458
        %v460 = vsel %vm442, %v454, %v459
        %v461 = vrot.slane %v330, 1
        %v462 = vrot.slane %v332, 2
        %v463 = vor.u32 %v461, %v462
        %v464 = vshrl.u32 %v298, 16
        %v466 = vrot.slane %v464, 1
        %v467 = vrot.slane %v337, 2
        %v468 = vor.u32 %v466, %v467
        %v469 = vsel %vm442, %v463, %v468
        %v470 = vrot.slane %v342, 1
        %v471 = vrot.slane %v344, 2
        %v472 = vor.u32 %v470, %v471
        %v473 = vshrl.u32 %v299, 16
        %v475 = vrot.slane %v473, 1
        %v476 = vrot.slane %v349, 2
        %v477 = vor.u32 %v475, %v476
        %v478 = vsel %vm442, %v472, %v477
        %v479 = vrot.slane %v354, 1
        %v480 = vrot.slane %v356, 2
        %v481 = vor.u32 %v479, %v480
        %v482 = vshrl.u32 %v300, 16
        %v484 = vrot.slane %v482, 1
        %v485 = vrot.slane %v361, 2
        %v486 = vor.u32 %v484, %v485
        %v487 = vsel %vm442, %v481, %v486
        %v488 = vrot.slane %v366, 1
        %v489 = vrot.slane %v368, 2
        %v490 = vor.u32 %v488, %v489
        %v491 = vshrl.u32 %v301, 16
        %v493 = vrot.slane %v491, 1
        %v494 = vrot.slane %v373, 2
        %v495 = vor.u32 %v493, %v494
        %v496 = vsel %vm442, %v490, %v495
        %v497 = vrot.slane %v378, 1
        %v498 = vrot.slane %v380, 2
        %v499 = vor.u32 %v497, %v498
        %v500 = vshrl.u32 %v302, 16
        %v502 = vrot.slane %v500, 1
        %v503 = vrot.slane %v385, 2
        %v504 = vor.u32 %v502, %v503
        %v505 = vsel %vm442, %v499, %v504
        %v506 = vrot.slane %v390, 1
        %v507 = vrot.slane %v392, 2
        %v508 = vor.u32 %v506, %v507
        %v509 = vshrl.u32 %v303, 16
        %v511 = vrot.slane %v509, 1
        %v512 = vrot.slane %v397, 2
        %v513 = vor.u32 %v511, %v512
        %v514 = vsel %vm442, %v508, %v513
        %515 = vrot.lane.b32.xlu0 %v451, 64
        %v516 = vpop.permute.xlu0 %515
        %517 = vrot.lane.b32.xlu0 %v460, 64
        %v518 = vpop.permute.xlu0 %517
        %519 = vrot.lane.b32.xlu0 %v469, 64
        %v520 = vpop.permute.xlu0 %519
        %521 = vrot.lane.b32.xlu0 %v478, 64
        %v522 = vpop.permute.xlu0 %521
        %523 = vrot.lane.b32.xlu0 %v487, 64
        %v524 = vpop.permute.xlu0 %523
        %525 = vrot.lane.b32.xlu0 %v496, 64
        %v526 = vpop.permute.xlu0 %525
        %527 = vrot.lane.b32.xlu0 %v505, 64
        %v528 = vpop.permute.xlu0 %527
        %529 = vrot.lane.b32.xlu0 %v514, 64
        %v530 = vpop.permute.xlu0 %529
        %vm531 = vcmask 1045504
        %v532 = vrot.slane %v272, 2
        %v533 = vrot.slane %v296, 2
        %v534 = vsel %vm531, %v532, %v533
        %v535 = vrot.slane %v273, 2
        %v536 = vrot.slane %v297, 2
        %v537 = vsel %vm531, %v535, %v536
        %v538 = vrot.slane %v274, 2
        %v539 = vrot.slane %v298, 2
        %v540 = vsel %vm531, %v538, %v539
        %v541 = vrot.slane %v275, 2
        %v542 = vrot.slane %v299, 2
        %v543 = vsel %vm531, %v541, %v542
        %v544 = vrot.slane %v276, 2
        %v545 = vrot.slane %v300, 2
        %v546 = vsel %vm531, %v544, %v545
        %v547 = vrot.slane %v277, 2
        %v548 = vrot.slane %v301, 2
        %v549 = vsel %vm531, %v547, %v548
        %v550 = vrot.slane %v278, 2
        %v551 = vrot.slane %v302, 2
        %v552 = vsel %vm531, %v550, %v551
        %v553 = vrot.slane %v279, 2
        %v554 = vrot.slane %v303, 2
        %v555 = vsel %vm531, %v553, %v554
        %vm556 = vcmask 523264
        %v558 = vsel %vm556, %v272, %v402
        %v561 = vsel %vm556, %v273, %v404
        %v564 = vsel %vm556, %v274, %v406
        %v567 = vsel %vm556, %v275, %v408
        %v570 = vsel %vm556, %v276, %v410
        %v573 = vsel %vm556, %v277, %v412
        %v576 = vsel %vm556, %v278, %v414
        %v579 = vsel %vm556, %v279, %v416
        %v583 = vsel %vm556, %v420, %v516
        %v587 = vsel %vm556, %v423, %v518
        %v591 = vsel %vm556, %v426, %v520
        %v595 = vsel %vm556, %v429, %v522
        %v599 = vsel %vm556, %v432, %v524
        %v603 = vsel %vm556, %v435, %v526
        %v607 = vsel %vm556, %v438, %v528
        %v611 = vsel %vm556, %v441, %v530
        %v614 = vlaneseq
        %v615 = vshrl.u32 %v614, 7
        %v616 = vsub.s32 0, %v615
        %v617 = vrot.slane %v215, %v616
        %v618 = vlaneseq
        %v619 = vshrl.u32 %v618, 7
        %v620 = vsub.s32 1, %v619
        %v621 = vrot.slane %v215, %v620
        %v664 = vunpack.c.l.b16 %v175
        %v665 = vunpack.c.h.b16 %v175
        %v666 = vunpack.c.l.b16 %v176
        %v667 = vunpack.c.h.b16 %v176
        %v668 = vunpack.c.l.b16 %v177
        %v669 = vunpack.c.h.b16 %v177
        %v670 = vunpack.c.l.b16 %v178
        %v671 = vunpack.c.h.b16 %v178
        %v672 = vunpack.c.l.b16 %v179
        %v673 = vunpack.c.h.b16 %v179
        %v674 = vunpack.c.l.b16 %v180
        %v675 = vunpack.c.h.b16 %v180
        %v676 = vunpack.c.l.b16 %v181
        %v677 = vunpack.c.h.b16 %v181
        %v678 = vunpack.c.l.b16 %v182
        %v679 = vunpack.c.h.b16 %v182
        %v680 = vunpack.c.l.b16 %v183
        %v681 = vunpack.c.h.b16 %v183
        %v682 = vunpack.c.l.b16 %v184
        %v683 = vunpack.c.h.b16 %v184
        %v684 = vunpack.c.l.b16 %v185
        %v685 = vunpack.c.h.b16 %v185
        %v686 = vunpack.c.l.b16 %v186
        %v687 = vunpack.c.h.b16 %v186
        %v688 = vunpack.c.l.b16 %v187
        %v689 = vunpack.c.h.b16 %v187
        %v690 = vunpack.c.l.b16 %v188
        %v691 = vunpack.c.h.b16 %v188
        %v692 = vunpack.c.l.b16 %v189
        %v693 = vunpack.c.h.b16 %v189
        %v694 = vunpack.c.l.b16 %v190
        %v695 = vunpack.c.h.b16 %v190
        %v696 = vunpack.c.l.b16 %v191
        %v697 = vunpack.c.h.b16 %v191
        %v698 = vunpack.c.l.b16 %v192
        %v699 = vunpack.c.h.b16 %v192
        %v700 = vunpack.c.l.b16 %v193
        %v701 = vunpack.c.h.b16 %v193
        %v702 = vunpack.c.l.b16 %v194
        %v703 = vunpack.c.h.b16 %v194
        %v704 = vunpack.c.l.b16 %v195
        %v705 = vunpack.c.h.b16 %v195
        %v706 = vunpack.c.l.b16 %v196
        %v707 = vunpack.c.h.b16 %v196
        %v708 = vunpack.c.l.b16 %v197
        %v709 = vunpack.c.h.b16 %v197
        %v710 = vunpack.c.l.b16 %v198
        %v711 = vunpack.c.h.b16 %v198
        %v712 = vunpack.c.l.b16 %v199
        %v713 = vunpack.c.h.b16 %v199
        %v714 = vunpack.c.l.b16 %v200
        %v715 = vunpack.c.h.b16 %v200
        %v716 = vunpack.c.l.b16 %v201
        %v717 = vunpack.c.h.b16 %v201
        %v718 = vunpack.c.l.b16 %v202
        %v719 = vunpack.c.h.b16 %v202
        %v720 = vunpack.c.l.b16 %v203
        %v721 = vunpack.c.h.b16 %v203
        %v722 = vunpack.c.l.b16 %v204
        %v723 = vunpack.c.h.b16 %v204
        %v724 = vunpack.c.l.b16 %v205
        %v725 = vunpack.c.h.b16 %v205
        %v726 = vunpack.c.l.b16 %v206
        %v727 = vunpack.c.h.b16 %v206
        %v728 = vunpack.c.l.b16 %v207
        %v729 = vunpack.c.h.b16 %v207
        %v730 = vunpack.c.l.b16 %v208
        %v731 = vunpack.c.h.b16 %v208
        %v732 = vunpack.c.l.b16 %v209
        %v733 = vunpack.c.h.b16 %v209
        %v734 = vunpack.c.l.b16 %v210
        %v735 = vunpack.c.h.b16 %v210
        %v736 = vunpack.c.l.b16 %v211
        %v737 = vunpack.c.h.b16 %v211
        %v738 = vunpack.c.l.b16 %v212
        %v739 = vunpack.c.h.b16 %v212
        %v740 = vunpack.c.l.b16 %v213
        %v741 = vunpack.c.h.b16 %v213
        %v742 = vunpack.c.l.b16 %v214
        %v743 = vunpack.c.h.b16 %v214
        %v744 = vpack.c.b16 %v666, %v664
        %v745 = vpack.c.b16 %v667, %v665
        %v746 = vpack.c.b16 %v670, %v668
        %v747 = vpack.c.b16 %v671, %v669
        %v748 = vpack.c.b16 %v674, %v672
        %v749 = vpack.c.b16 %v675, %v673
        %v750 = vpack.c.b16 %v678, %v676
        %v751 = vpack.c.b16 %v679, %v677
        %v752 = vpack.c.b16 %v682, %v680
        %v753 = vpack.c.b16 %v683, %v681
        %v754 = vpack.c.b16 %v686, %v684
        %v755 = vpack.c.b16 %v687, %v685
        %v756 = vpack.c.b16 %v690, %v688
        %v757 = vpack.c.b16 %v691, %v689
        %v758 = vpack.c.b16 %v694, %v692
        %v759 = vpack.c.b16 %v695, %v693
        %v760 = vpack.c.b16 %v698, %v696
        %v761 = vpack.c.b16 %v699, %v697
        %v762 = vpack.c.b16 %v702, %v700
        %v763 = vpack.c.b16 %v703, %v701
        %v764 = vpack.c.b16 %v706, %v704
        %v765 = vpack.c.b16 %v707, %v705
        %v766 = vpack.c.b16 %v710, %v708
        %v767 = vpack.c.b16 %v711, %v709
        %v768 = vpack.c.b16 %v714, %v712
        %v769 = vpack.c.b16 %v715, %v713
        %v770 = vpack.c.b16 %v718, %v716
        %v771 = vpack.c.b16 %v719, %v717
        %v772 = vpack.c.b16 %v722, %v720
        %v773 = vpack.c.b16 %v723, %v721
        %v774 = vpack.c.b16 %v726, %v724
        %v775 = vpack.c.b16 %v727, %v725
        %v776 = vpack.c.b16 %v730, %v728
        %v777 = vpack.c.b16 %v731, %v729
        %v778 = vpack.c.b16 %v734, %v732
        %v779 = vpack.c.b16 %v735, %v733
        %v780 = vpack.c.b16 %v738, %v736
        %v781 = vpack.c.b16 %v739, %v737
        %v782 = vpack.c.b16 %v742, %v740
        %v783 = vpack.c.b16 %v743, %v741
        %v825 = vsel %vm556, %v534, 0
        %v828 = vsel %vm556, %v537, 0
        %v831 = vsel %vm556, %v540, 0
        %v834 = vsel %vm556, %v543, 0
        %v837 = vsel %vm556, %v546, 0
        %v840 = vsel %vm556, %v549, 0
        %v843 = vsel %vm556, %v552, 0
        %v846 = vsel %vm556, %v555, 0
        %848 = vmatprep.subr.bf16.mxu0 %v745
        %849 = vmatpush1.bf16.msra.mxu0 %v744
        %850 = vmatprep.subr.bf16.mxu0 %v747
        %851 = vmatpush1.bf16.msra.mxu0 %v746
        %852 = vmatprep.subr.bf16.mxu0 %v749
        %853 = vmatpush1.bf16.msra.mxu0 %v748
        %854 = vmatprep.subr.bf16.mxu0 %v751
        %855 = vmatpush1.bf16.msra.mxu0 %v750
        %856 = vmatprep.subr.bf16.mxu0 %v753
        %857 = vmatpush1.bf16.msra.mxu0 %v752
        %858 = vmatprep.subr.bf16.mxu0 %v755
        %859 = vmatpush1.bf16.msra.mxu0 %v754
        %860 = vmatprep.subr.bf16.mxu0 %v757
        %861 = vmatpush1.bf16.msra.mxu0 %v756
        %862 = vmatprep.subr.bf16.mxu0 %v759
        %863 = vmatpush1.bf16.msra.mxu0 %v758
        %864 = vmatprep.subr.bf16.mxu0 %v761
        %865 = vmatpush1.bf16.msra.mxu0 %v760
        %866 = vmatprep.subr.bf16.mxu0 %v763
        %867 = vmatpush1.bf16.msra.mxu0 %v762
        %868 = vmatprep.subr.bf16.mxu0 %v765
        %869 = vmatpush1.bf16.msra.mxu0 %v764
        %870 = vmatprep.subr.bf16.mxu0 %v767
        %871 = vmatpush1.bf16.msra.mxu0 %v766
        %872 = vmatprep.subr.bf16.mxu0 %v769
        %873 = vmatpush1.bf16.msra.mxu0 %v768
        %874 = vmatprep.subr.bf16.mxu0 %v771
        %875 = vmatpush1.bf16.msra.mxu0 %v770
        %876 = vmatprep.subr.bf16.mxu0 %v773
        %877 = vmatpush1.bf16.msra.mxu0 %v772
        %878 = vmatprep.subr.bf16.mxu0 %v775
        %879 = vmatpush1.bf16.msra.mxu0 %v774
        %880 = vmatprep.mubr.bf16.mxu0 %v583
        %881 = vmatmul.mubr.bf16.gmra.mrb[0].mxu0 %v558
        %v882 = vpop.f32.mrb[0].mxu0
        %v883 = vadd.f32 %v617, %v882
        %v884 = vpop.f32.mrb[0].mxu0
        %v885 = vadd.f32 %v621, %v884
        %v886 = vpop.f32.mrb[0].mxu0
        %v887 = vadd.f32 %v617, %v886
        %v888 = vpop.f32.mrb[0].mxu0
        %v889 = vadd.f32 %v621, %v888
        %890 = vmatprep.mubr.bf16.mxu0 %v587
        %891 = vmatmul.mubr.bf16.gmra.mrb[0].mxu0 %v561
        %v892 = vpop.f32.mrb[0].mxu0
        %v893 = vadd.f32 %v617, %v892
        %v894 = vpop.f32.mrb[0].mxu0
        %v895 = vadd.f32 %v621, %v894
        %v896 = vpop.f32.mrb[0].mxu0
        %v897 = vadd.f32 %v617, %v896
        %v898 = vpop.f32.mrb[0].mxu0
        %v899 = vadd.f32 %v621, %v898
        %900 = vmatprep.mubr.bf16.mxu0 %v591
        %901 = vmatmul.mubr.bf16.gmra.mrb[0].mxu0 %v564
        %v902 = vpop.f32.mrb[0].mxu0
        %v903 = vadd.f32 %v617, %v902
        %v904 = vpop.f32.mrb[0].mxu0
        %v905 = vadd.f32 %v621, %v904
        %v906 = vpop.f32.mrb[0].mxu0
        %v907 = vadd.f32 %v617, %v906
        %v908 = vpop.f32.mrb[0].mxu0
        %v909 = vadd.f32 %v621, %v908
        %910 = vmatprep.mubr.bf16.mxu0 %v595
        %911 = vmatmul.mubr.bf16.gmra.mrb[0].mxu0 %v567
        %v912 = vpop.f32.mrb[0].mxu0
        %v913 = vadd.f32 %v617, %v912
        %v914 = vpop.f32.mrb[0].mxu0
        %v915 = vadd.f32 %v621, %v914
        %v916 = vpop.f32.mrb[0].mxu0
        %v917 = vadd.f32 %v617, %v916
        %v918 = vpop.f32.mrb[0].mxu0
        %v919 = vadd.f32 %v621, %v918
        %920 = vmatprep.mubr.bf16.mxu0 %v599
        %921 = vmatmul.mubr.bf16.gmra.mrb[0].mxu0 %v570
        %v922 = vpop.f32.mrb[0].mxu0
        %v923 = vadd.f32 %v617, %v922
        %v924 = vpop.f32.mrb[0].mxu0
        %v925 = vadd.f32 %v621, %v924
        %v926 = vpop.f32.mrb[0].mxu0
        %v927 = vadd.f32 %v617, %v926
        %v928 = vpop.f32.mrb[0].mxu0
        %v929 = vadd.f32 %v621, %v928
        %930 = vmatprep.mubr.bf16.mxu0 %v603
        %931 = vmatmul.mubr.bf16.gmra.mrb[0].mxu0 %v573
        %v932 = vpop.f32.mrb[0].mxu0
        %v933 = vadd.f32 %v617, %v932
        %v934 = vpop.f32.mrb[0].mxu0
        %v935 = vadd.f32 %v621, %v934
        %v936 = vpop.f32.mrb[0].mxu0
        %v937 = vadd.f32 %v617, %v936
        %v938 = vpop.f32.mrb[0].mxu0
        %v939 = vadd.f32 %v621, %v938
        %940 = vmatprep.mubr.bf16.mxu0 %v607
        %941 = vmatmul.mubr.bf16.gmra.mrb[0].mxu0 %v576
        %v942 = vpop.f32.mrb[0].mxu0
        %v943 = vadd.f32 %v617, %v942
        %v944 = vpop.f32.mrb[0].mxu0
        %v945 = vadd.f32 %v621, %v944
        %v946 = vpop.f32.mrb[0].mxu0
        %v947 = vadd.f32 %v617, %v946
        %v948 = vpop.f32.mrb[0].mxu0
        %v949 = vadd.f32 %v621, %v948
        %950 = vmatprep.mubr.bf16.mxu0 %v611
        %951 = vmatmul.mubr.bf16.gmra.mrb[0].mxu0 %v579
        %v952 = vpop.f32.mrb[0].mxu0
        %v953 = vadd.f32 %v617, %v952
        %v954 = vpop.f32.mrb[0].mxu0
        %v955 = vadd.f32 %v621, %v954
        %v956 = vpop.f32.mrb[0].mxu0
        %v957 = vadd.f32 %v617, %v956
        %v958 = vpop.f32.mrb[0].mxu0
        %v959 = vadd.f32 %v621, %v958
        %960 = vdwg.mxu0
        %961 = vmatprep.subr.bf16.mxu0 %v777
        %962 = vmatpush1.bf16.msra.mxu0 %v776
        %963 = vmatprep.subr.bf16.mxu0 %v779
        %964 = vmatpush1.bf16.msra.mxu0 %v778
        %965 = vmatprep.subr.bf16.mxu0 %v781
        %966 = vmatpush1.bf16.msra.mxu0 %v780
        %967 = vmatprep.subr.bf16.mxu0 %v783
        %968 = vmatpush1.bf16.msra.mxu0 %v782
        %969 = vmatprep.subr.bf16.mxu0 0
        %970 = vmatpush1.bf16.msra.mxu0 0
        %971 = vmatprep.subr.bf16.mxu0 0
        %972 = vmatpush1.bf16.msra.mxu0 0
        %973 = vmatprep.subr.bf16.mxu0 0
        %974 = vmatpush1.bf16.msra.mxu0 0
        %975 = vmatprep.subr.bf16.mxu0 0
        %976 = vmatpush1.bf16.msra.mxu0 0
        %977 = vmatprep.subr.bf16.mxu0 0
        %978 = vmatpush1.bf16.msra.mxu0 0
        %979 = vmatprep.subr.bf16.mxu0 0
        %980 = vmatpush1.bf16.msra.mxu0 0
        %981 = vmatprep.subr.bf16.mxu0 0
        %982 = vmatpush1.bf16.msra.mxu0 0
        %983 = vmatprep.subr.bf16.mxu0 0
        %984 = vmatpush1.bf16.msra.mxu0 0
        %985 = vmatprep.subr.bf16.mxu0 0
        %986 = vmatpush1.bf16.msra.mxu0 0
        %987 = vmatprep.subr.bf16.mxu0 0
        %988 = vmatpush1.bf16.msra.mxu0 0
        %989 = vmatprep.subr.bf16.mxu0 0
        %990 = vmatpush1.bf16.msra.mxu0 0
        %991 = vmatprep.subr.bf16.mxu0 0
        %992 = vmatpush1.bf16.msra.mxu0 0
        %993 = vmatprep.mubr.bf16.mxu0 0
        %994 = vmatmul.mubr.bf16.gmra.mrb[0].mxu0 %v825
        %v995 = vpop.f32.mrb[0].mxu0
        %v996 = vadd.f32 %v883, %v995
        %v997 = vpop.f32.mrb[0].mxu0
        %v998 = vadd.f32 %v885, %v997
        %v999 = vpop.f32.mrb[0].mxu0
        %v1000 = vadd.f32 %v887, %v999
        %v1001 = vpop.f32.mrb[0].mxu0
        %v1002 = vadd.f32 %v889, %v1001
        %1003 = vmatprep.mubr.bf16.mxu0 0
        %1004 = vmatmul.mubr.bf16.gmra.mrb[0].mxu0 %v828
        %v1005 = vpop.f32.mrb[0].mxu0
        %v1006 = vadd.f32 %v893, %v1005
        %v1007 = vpop.f32.mrb[0].mxu0
        %v1008 = vadd.f32 %v895, %v1007
        %v1009 = vpop.f32.mrb[0].mxu0
        %v1010 = vadd.f32 %v897, %v1009
        %v1011 = vpop.f32.mrb[0].mxu0
        %v1012 = vadd.f32 %v899, %v1011
        %1013 = vmatprep.mubr.bf16.mxu0 0
        %1014 = vmatmul.mubr.bf16.gmra.mrb[0].mxu0 %v831
        %v1015 = vpop.f32.mrb[0].mxu0
        %v1016 = vadd.f32 %v903, %v1015
        %v1017 = vpop.f32.mrb[0].mxu0
        %v1018 = vadd.f32 %v905, %v1017
        %v1019 = vpop.f32.mrb[0].mxu0
        %v1020 = vadd.f32 %v907, %v1019
        %v1021 = vpop.f32.mrb[0].mxu0
        %v1022 = vadd.f32 %v909, %v1021
        %1023 = vmatprep.mubr.bf16.mxu0 0
        %1024 = vmatmul.mubr.bf16.gmra.mrb[0].mxu0 %v834
        %v1025 = vpop.f32.mrb[0].mxu0
        %v1026 = vadd.f32 %v913, %v1025
        %v1027 = vpop.f32.mrb[0].mxu0
        %v1028 = vadd.f32 %v915, %v1027
        %v1029 = vpop.f32.mrb[0].mxu0
        %v1030 = vadd.f32 %v917, %v1029
        %v1031 = vpop.f32.mrb[0].mxu0
        %v1032 = vadd.f32 %v919, %v1031
        %1033 = vmatprep.mubr.bf16.mxu0 0
        %1034 = vmatmul.mubr.bf16.gmra.mrb[0].mxu0 %v837
        %v1035 = vpop.f32.mrb[0].mxu0
        %v1036 = vadd.f32 %v923, %v1035
        %v1037 = vpop.f32.mrb[0].mxu0
        %v1038 = vadd.f32 %v925, %v1037
        %v1039 = vpop.f32.mrb[0].mxu0
        %v1040 = vadd.f32 %v927, %v1039
        %v1041 = vpop.f32.mrb[0].mxu0
        %v1042 = vadd.f32 %v929, %v1041
        %1043 = vmatprep.mubr.bf16.mxu0 0
        %1044 = vmatmul.mubr.bf16.gmra.mrb[0].mxu0 %v840
        %v1045 = vpop.f32.mrb[0].mxu0
        %v1046 = vadd.f32 %v933, %v1045
        %v1047 = vpop.f32.mrb[0].mxu0
        %v1048 = vadd.f32 %v935, %v1047
        %v1049 = vpop.f32.mrb[0].mxu0
        %v1050 = vadd.f32 %v937, %v1049
        %v1051 = vpop.f32.mrb[0].mxu0
        %v1052 = vadd.f32 %v939, %v1051
        %1053 = vmatprep.mubr.bf16.mxu0 0
        %1054 = vmatmul.mubr.bf16.gmra.mrb[0].mxu0 %v843
        %v1055 = vpop.f32.mrb[0].mxu0
        %v1056 = vadd.f32 %v943, %v1055
        %v1057 = vpop.f32.mrb[0].mxu0
        %v1058 = vadd.f32 %v945, %v1057
        %v1059 = vpop.f32.mrb[0].mxu0
        %v1060 = vadd.f32 %v947, %v1059
        %v1061 = vpop.f32.mrb[0].mxu0
        %v1062 = vadd.f32 %v949, %v1061
        %1063 = vmatprep.mubr.bf16.mxu0 0
        %1064 = vmatmul.mubr.bf16.gmra.mrb[0].mxu0 %v846
        %v1065 = vpop.f32.mrb[0].mxu0
        %v1066 = vadd.f32 %v953, %v1065
        %v1067 = vpop.f32.mrb[0].mxu0
        %v1068 = vadd.f32 %v955, %v1067
        %v1069 = vpop.f32.mrb[0].mxu0
        %v1070 = vadd.f32 %v957, %v1069
        %v1071 = vpop.f32.mrb[0].mxu0
        %v1072 = vadd.f32 %v959, %v1071
        %1073 = vdwg.mxu0
        %v1074 = vmax.f32 %v996, 0.0
        %v1075 = vmax.f32 %v998, 0.0
        %v1076 = vmax.f32 %v1000, 0.0
        %v1077 = vmax.f32 %v1002, 0.0
        %v1078 = vmax.f32 %v1006, 0.0
        %v1079 = vmax.f32 %v1008, 0.0
        %v1080 = vmax.f32 %v1010, 0.0
        %v1081 = vmax.f32 %v1012, 0.0
        %v1082 = vmax.f32 %v1016, 0.0
        %v1083 = vmax.f32 %v1018, 0.0
        %v1084 = vmax.f32 %v1020, 0.0
        %v1085 = vmax.f32 %v1022, 0.0
        %v1086 = vmax.f32 %v1026, 0.0
        %v1087 = vmax.f32 %v1028, 0.0
        %v1088 = vmax.f32 %v1030, 0.0
        %v1089 = vmax.f32 %v1032, 0.0
        %v1090 = vmax.f32 %v1036, 0.0
        %v1091 = vmax.f32 %v1038, 0.0
        %v1092 = vmax.f32 %v1040, 0.0
        %v1093 = vmax.f32 %v1042, 0.0
        %v1094 = vmax.f32 %v1046, 0.0
        %v1095 = vmax.f32 %v1048, 0.0
        %v1096 = vmax.f32 %v1050, 0.0
        %v1097 = vmax.f32 %v1052, 0.0
        %v1098 = vmax.f32 %v1056, 0.0
        %v1099 = vmax.f32 %v1058, 0.0
        %v1100 = vmax.f32 %v1060, 0.0
        %v1101 = vmax.f32 %v1062, 0.0
        %v1102 = vmax.f32 %v1066, 0.0
        %v1103 = vmax.f32 %v1068, 0.0
        %v1104 = vmax.f32 %v1070, 0.0
        %v1105 = vmax.f32 %v1072, 0.0
        %v1106 = vmax.f32 %v1074, %v1076
        %v1107 = vrot.slane %v1106, 4
        %v1108 = vmax.f32 %v1106, %v1107
        %v1109 = vrot.slane %v1108, 2
        %v1110 = vmax.f32 %v1108, %v1109
        %v1111 = vrot.slane %v1110, 1
        %v1112 = vmax.f32 %v1110, %v1111
        %v1113 = vmax.f32 %v1075, %v1077
        %v1114 = vrot.slane %v1113, 4
        %v1115 = vmax.f32 %v1113, %v1114
        %v1116 = vrot.slane %v1115, 2
        %v1117 = vmax.f32 %v1115, %v1116
        %v1118 = vrot.slane %v1117, 1
        %v1119 = vmax.f32 %v1117, %v1118
        %v1120 = vmax.f32 %v1078, %v1080
        %v1121 = vrot.slane %v1120, 4
        %v1122 = vmax.f32 %v1120, %v1121
        %v1123 = vrot.slane %v1122, 2
        %v1124 = vmax.f32 %v1122, %v1123
        %v1125 = vrot.slane %v1124, 1
        %v1126 = vmax.f32 %v1124, %v1125
        %v1127 = vmax.f32 %v1079, %v1081
        %v1128 = vrot.slane %v1127, 4
        %v1129 = vmax.f32 %v1127, %v1128
        %v1130 = vrot.slane %v1129, 2
        %v1131 = vmax.f32 %v1129, %v1130
        %v1132 = vrot.slane %v1131, 1
        %v1133 = vmax.f32 %v1131, %v1132
        %v1134 = vmax.f32 %v1082, %v1084
        %v1135 = vrot.slane %v1134, 4
        %v1136 = vmax.f32 %v1134, %v1135
        %v1137 = vrot.slane %v1136, 2
        %v1138 = vmax.f32 %v1136, %v1137
        %v1139 = vrot.slane %v1138, 1
        %v1140 = vmax.f32 %v1138, %v1139
        %v1141 = vmax.f32 %v1083, %v1085
        %v1142 = vrot.slane %v1141, 4
        %v1143 = vmax.f32 %v1141, %v1142
        %v1144 = vrot.slane %v1143, 2
        %v1145 = vmax.f32 %v1143, %v1144
        %v1146 = vrot.slane %v1145, 1
        %v1147 = vmax.f32 %v1145, %v1146
        %v1148 = vmax.f32 %v1086, %v1088
        %v1149 = vrot.slane %v1148, 4
        %v1150 = vmax.f32 %v1148, %v1149
        %v1151 = vrot.slane %v1150, 2
        %v1152 = vmax.f32 %v1150, %v1151
        %v1153 = vrot.slane %v1152, 1
        %v1154 = vmax.f32 %v1152, %v1153
        %v1155 = vmax.f32 %v1087, %v1089
        %v1156 = vrot.slane %v1155, 4
        %v1157 = vmax.f32 %v1155, %v1156
        %v1158 = vrot.slane %v1157, 2
        %v1159 = vmax.f32 %v1157, %v1158
        %v1160 = vrot.slane %v1159, 1
        %v1161 = vmax.f32 %v1159, %v1160
        %v1162 = vmax.f32 %v1090, %v1092
        %v1163 = vrot.slane %v1162, 4
        %v1164 = vmax.f32 %v1162, %v1163
        %v1165 = vrot.slane %v1164, 2
        %v1166 = vmax.f32 %v1164, %v1165
        %v1167 = vrot.slane %v1166, 1
        %v1168 = vmax.f32 %v1166, %v1167
        %v1169 = vmax.f32 %v1091, %v1093
        %v1170 = vrot.slane %v1169, 4
        %v1171 = vmax.f32 %v1169, %v1170
        %v1172 = vrot.slane %v1171, 2
        %v1173 = vmax.f32 %v1171, %v1172
        %v1174 = vrot.slane %v1173, 1
        %v1175 = vmax.f32 %v1173, %v1174
        %v1176 = vmax.f32 %v1094, %v1096
        %v1177 = vrot.slane %v1176, 4
        %v1178 = vmax.f32 %v1176, %v1177
        %v1179 = vrot.slane %v1178, 2
        %v1180 = vmax.f32 %v1178, %v1179
        %v1181 = vrot.slane %v1180, 1
        %v1182 = vmax.f32 %v1180, %v1181
        %v1183 = vmax.f32 %v1095, %v1097
        %v1184 = vrot.slane %v1183, 4
        %v1185 = vmax.f32 %v1183, %v1184
        %v1186 = vrot.slane %v1185, 2
        %v1187 = vmax.f32 %v1185, %v1186
        %v1188 = vrot.slane %v1187, 1
        %v1189 = vmax.f32 %v1187, %v1188
        %v1190 = vmax.f32 %v1098, %v1100
        %v1191 = vrot.slane %v1190, 4
        %v1192 = vmax.f32 %v1190, %v1191
        %v1193 = vrot.slane %v1192, 2
        %v1194 = vmax.f32 %v1192, %v1193
        %v1195 = vrot.slane %v1194, 1
        %v1196 = vmax.f32 %v1194, %v1195
        %v1197 = vmax.f32 %v1099, %v1101
        %v1198 = vrot.slane %v1197, 4
        %v1199 = vmax.f32 %v1197, %v1198
        %v1200 = vrot.slane %v1199, 2
        %v1201 = vmax.f32 %v1199, %v1200
        %v1202 = vrot.slane %v1201, 1
        %v1203 = vmax.f32 %v1201, %v1202
        %v1204 = vmax.f32 %v1102, %v1104
        %v1205 = vrot.slane %v1204, 4
        %v1206 = vmax.f32 %v1204, %v1205
        %v1207 = vrot.slane %v1206, 2
        %v1208 = vmax.f32 %v1206, %v1207
        %v1209 = vrot.slane %v1208, 1
        %v1210 = vmax.f32 %v1208, %v1209
        %v1211 = vmax.f32 %v1103, %v1105
        %v1212 = vrot.slane %v1211, 4
        %v1213 = vmax.f32 %v1211, %v1212
        %v1214 = vrot.slane %v1213, 2
        %v1215 = vmax.f32 %v1213, %v1214
        %v1216 = vrot.slane %v1215, 1
        %v1217 = vmax.f32 %v1215, %v1216
        %v1218 = vmax.f32 %v1112, 0.0
        %v1219 = vmax.f32 %v1119, 0.0
        %v1220 = vmax.f32 %v1126, 0.0
        %v1221 = vmax.f32 %v1133, 0.0
        %v1222 = vmax.f32 %v1140, 0.0
        %v1223 = vmax.f32 %v1147, 0.0
        %v1224 = vmax.f32 %v1154, 0.0
        %v1225 = vmax.f32 %v1161, 0.0
        %v1226 = vmax.f32 %v1168, 0.0
        %v1227 = vmax.f32 %v1175, 0.0
        %v1228 = vmax.f32 %v1182, 0.0
        %v1229 = vmax.f32 %v1189, 0.0
        %v1230 = vmax.f32 %v1196, 0.0
        %v1231 = vmax.f32 %v1203, 0.0
        %v1232 = vmax.f32 %v1210, 0.0
        %v1233 = vmax.f32 %v1217, 0.0
        %v1234 = vld [vmem:[%s172 + $0x8] sm:$0xf]
        %v1235 = vld [vmem:[%s172 + $0xc] sm:$0xf]
        %v1236 = vld [vmem:[%s172 + $0x10] sm:$0x3]
        %v1237 = vld [vmem:[%s172 + $0x1c] sm:$0xf]
        %v1238 = vld [vmem:[%s172 + $0x20] sm:$0xf]
        %v1239 = vld [vmem:[%s172 + $0x24] sm:$0x3]
        %v1240 = vld [vmem:[%s172 + $0x30] sm:$0xf]
        %v1241 = vld [vmem:[%s172 + $0x34] sm:$0xf]
        %v1242 = vld [vmem:[%s172 + $0x38] sm:$0x3]
        %v1243 = vld [vmem:[%s172 + $0x44] sm:$0xf]
        %v1244 = vld [vmem:[%s172 + $0x48] sm:$0xf]
        %v1245 = vld [vmem:[%s172 + $0x4c] sm:$0x3]
        %v1246 = vld [vmem:[%s172 + $0x58] sm:$0xf]
        %v1247 = vld [vmem:[%s172 + $0x5c] sm:$0xf]
        %v1248 = vld [vmem:[%s172 + $0x60] sm:$0x3]
        %v1249 = vld [vmem:[%s172 + $0x6c] sm:$0xf]
        %v1250 = vld [vmem:[%s172 + $0x70] sm:$0xf]
        %v1251 = vld [vmem:[%s172 + $0x74] sm:$0x3]
        %v1252 = vld [vmem:[%s172 + $0x80] sm:$0xf]
        %v1253 = vld [vmem:[%s172 + $0x84] sm:$0xf]
        %v1254 = vld [vmem:[%s172 + $0x88] sm:$0x3]
        %v1255 = vld [vmem:[%s172 + $0x94] sm:$0xf]
        %v1256 = vld [vmem:[%s172 + $0x98] sm:$0xf]
        %v1257 = vld [vmem:[%s172 + $0x9c] sm:$0x3]
        %v1274 = vunpack.c.l.b16 %v1234
        %v1275 = vunpack.c.l.b16 %v1235
        %v1276 = vunpack.c.l.b16 %v1237
        %v1277 = vunpack.c.l.b16 %v1238
        %v1278 = vunpack.c.l.b16 %v1240
        %v1279 = vunpack.c.l.b16 %v1241
        %v1280 = vunpack.c.l.b16 %v1243
        %v1281 = vunpack.c.l.b16 %v1244
        %v1282 = vunpack.c.l.b16 %v1246
        %v1283 = vunpack.c.l.b16 %v1247
        %v1284 = vunpack.c.l.b16 %v1249
        %v1285 = vunpack.c.l.b16 %v1250
        %v1286 = vunpack.c.l.b16 %v1252
        %v1287 = vunpack.c.l.b16 %v1253
        %v1288 = vunpack.c.l.b16 %v1255
        %v1289 = vunpack.c.l.b16 %v1256
        %v1290 = vpack.c.b16 %v1275, %v1274
        %v1291 = vpack.c.b16 %v1277, %v1276
        %v1292 = vpack.c.b16 %v1279, %v1278
        %v1293 = vpack.c.b16 %v1281, %v1280
        %v1294 = vpack.c.b16 %v1283, %v1282
        %v1295 = vpack.c.b16 %v1285, %v1284
        %v1296 = vpack.c.b16 %v1287, %v1286
        %v1297 = vpack.c.b16 %v1289, %v1288
        %v1306 = vunpack.c.l.b16 %v1236
        %v1307 = vunpack.c.l.b16 %v1239
        %v1308 = vunpack.c.l.b16 %v1242
        %v1309 = vunpack.c.l.b16 %v1245
        %v1310 = vunpack.c.l.b16 %v1248
        %v1311 = vunpack.c.l.b16 %v1251
        %v1312 = vunpack.c.l.b16 %v1254
        %v1313 = vunpack.c.l.b16 %v1257
        %v1314 = vpack.c.b16 %v1306, %v1306
        %v1315 = vpack.c.b16 %v1307, %v1307
        %v1316 = vpack.c.b16 %v1308, %v1308
        %v1317 = vpack.c.b16 %v1309, %v1309
        %v1318 = vpack.c.b16 %v1310, %v1310
        %v1319 = vpack.c.b16 %v1311, %v1311
        %v1320 = vpack.c.b16 %v1312, %v1312
        %v1321 = vpack.c.b16 %v1313, %v1313
        %v1323 = vshrl.u32 %v1290, 16
        %v1325 = vshll.u32 %v1290, 16
        %v1327 = vrot.slane %v1325, 1
        %v1328 = vor.u32 %v1323, %v1327
        %v1330 = vshll.u32 %v1314, 16
        %v1332 = vrot.slane %v1330, 1
        %v1333 = vsel %vm304, %v1328, %v1332
        %v1335 = vshrl.u32 %v1291, 16
        %v1337 = vshll.u32 %v1291, 16
        %v1339 = vrot.slane %v1337, 1
        %v1340 = vor.u32 %v1335, %v1339
        %v1342 = vshll.u32 %v1315, 16
        %v1344 = vrot.slane %v1342, 1
        %v1345 = vsel %vm304, %v1340, %v1344
        %v1347 = vshrl.u32 %v1292, 16
        %v1349 = vshll.u32 %v1292, 16
        %v1351 = vrot.slane %v1349, 1
        %v1352 = vor.u32 %v1347, %v1351
        %v1354 = vshll.u32 %v1316, 16
        %v1356 = vrot.slane %v1354, 1
        %v1357 = vsel %vm304, %v1352, %v1356
        %v1359 = vshrl.u32 %v1293, 16
        %v1361 = vshll.u32 %v1293, 16
        %v1363 = vrot.slane %v1361, 1
        %v1364 = vor.u32 %v1359, %v1363
        %v1366 = vshll.u32 %v1317, 16
        %v1368 = vrot.slane %v1366, 1
        %v1369 = vsel %vm304, %v1364, %v1368
        %v1371 = vshrl.u32 %v1294, 16
        %v1373 = vshll.u32 %v1294, 16
        %v1375 = vrot.slane %v1373, 1
        %v1376 = vor.u32 %v1371, %v1375
        %v1378 = vshll.u32 %v1318, 16
        %v1380 = vrot.slane %v1378, 1
        %v1381 = vsel %vm304, %v1376, %v1380
        %v1383 = vshrl.u32 %v1295, 16
        %v1385 = vshll.u32 %v1295, 16
        %v1387 = vrot.slane %v1385, 1
        %v1388 = vor.u32 %v1383, %v1387
        %v1390 = vshll.u32 %v1319, 16
        %v1392 = vrot.slane %v1390, 1
        %v1393 = vsel %vm304, %v1388, %v1392
        %v1395 = vshrl.u32 %v1296, 16
        %v1397 = vshll.u32 %v1296, 16
        %v1399 = vrot.slane %v1397, 1
        %v1400 = vor.u32 %v1395, %v1399
        %v1402 = vshll.u32 %v1320, 16
        %v1404 = vrot.slane %v1402, 1
        %v1405 = vsel %vm304, %v1400, %v1404
        %v1407 = vshrl.u32 %v1297, 16
        %v1409 = vshll.u32 %v1297, 16
        %v1411 = vrot.slane %v1409, 1
        %v1412 = vor.u32 %v1407, %v1411
        %v1414 = vshll.u32 %v1321, 16
        %v1416 = vrot.slane %v1414, 1
        %v1417 = vsel %vm304, %v1412, %v1416
        %1418 = vrot.lane.b32.xlu0 %v1333, 64
        %v1419 = vpop.permute.xlu0 %1418
        %1420 = vrot.lane.b32.xlu0 %v1345, 64
        %v1421 = vpop.permute.xlu0 %1420
        %1422 = vrot.lane.b32.xlu0 %v1357, 64
        %v1423 = vpop.permute.xlu0 %1422
        %1424 = vrot.lane.b32.xlu0 %v1369, 64
        %v1425 = vpop.permute.xlu0 %1424
        %1426 = vrot.lane.b32.xlu0 %v1381, 64
        %v1427 = vpop.permute.xlu0 %1426
        %1428 = vrot.lane.b32.xlu0 %v1393, 64
        %v1429 = vpop.permute.xlu0 %1428
        %1430 = vrot.lane.b32.xlu0 %v1405, 64
        %v1431 = vpop.permute.xlu0 %1430
        %1432 = vrot.lane.b32.xlu0 %v1417, 64
        %v1433 = vpop.permute.xlu0 %1432
        %v1434 = vrot.slane %v1290, 1
        %v1435 = vrot.slane %v1314, 1
        %v1436 = vsel %vm417, %v1434, %v1435
        %v1437 = vrot.slane %v1291, 1
        %v1438 = vrot.slane %v1315, 1
        %v1439 = vsel %vm417, %v1437, %v1438
        %v1440 = vrot.slane %v1292, 1
        %v1441 = vrot.slane %v1316, 1
        %v1442 = vsel %vm417, %v1440, %v1441
        %v1443 = vrot.slane %v1293, 1
        %v1444 = vrot.slane %v1317, 1
        %v1445 = vsel %vm417, %v1443, %v1444
        %v1446 = vrot.slane %v1294, 1
        %v1447 = vrot.slane %v1318, 1
        %v1448 = vsel %vm417, %v1446, %v1447
        %v1449 = vrot.slane %v1295, 1
        %v1450 = vrot.slane %v1319, 1
        %v1451 = vsel %vm417, %v1449, %v1450
        %v1452 = vrot.slane %v1296, 1
        %v1453 = vrot.slane %v1320, 1
        %v1454 = vsel %vm417, %v1452, %v1453
        %v1455 = vrot.slane %v1297, 1
        %v1456 = vrot.slane %v1321, 1
        %v1457 = vsel %vm417, %v1455, %v1456
        %v1458 = vrot.slane %v1323, 1
        %v1459 = vrot.slane %v1325, 2
        %v1460 = vor.u32 %v1458, %v1459
        %v1461 = vshrl.u32 %v1314, 16
        %v1463 = vrot.slane %v1461, 1
        %v1464 = vrot.slane %v1330, 2
        %v1465 = vor.u32 %v1463, %v1464
        %v1466 = vsel %vm442, %v1460, %v1465
        %v1467 = vrot.slane %v1335, 1
        %v1468 = vrot.slane %v1337, 2
        %v1469 = vor.u32 %v1467, %v1468
        %v1470 = vshrl.u32 %v1315, 16
        %v1472 = vrot.slane %v1470, 1
        %v1473 = vrot.slane %v1342, 2
        %v1474 = vor.u32 %v1472, %v1473
        %v1475 = vsel %vm442, %v1469, %v1474
        %v1476 = vrot.slane %v1347, 1
        %v1477 = vrot.slane %v1349, 2
        %v1478 = vor.u32 %v1476, %v1477
        %v1479 = vshrl.u32 %v1316, 16
        %v1481 = vrot.slane %v1479, 1
        %v1482 = vrot.slane %v1354, 2
        %v1483 = vor.u32 %v1481, %v1482
        %v1484 = vsel %vm442, %v1478, %v1483
        %v1485 = vrot.slane %v1359, 1
        %v1486 = vrot.slane %v1361, 2
        %v1487 = vor.u32 %v1485, %v1486
        %v1488 = vshrl.u32 %v1317, 16
        %v1490 = vrot.slane %v1488, 1
        %v1491 = vrot.slane %v1366, 2
        %v1492 = vor.u32 %v1490, %v1491
        %v1493 = vsel %vm442, %v1487, %v1492
        %v1494 = vrot.slane %v1371, 1
        %v1495 = vrot.slane %v1373, 2
        %v1496 = vor.u32 %v1494, %v1495
        %v1497 = vshrl.u32 %v1318, 16
        %v1499 = vrot.slane %v1497, 1
        %v1500 = vrot.slane %v1378, 2
        %v1501 = vor.u32 %v1499, %v1500
        %v1502 = vsel %vm442, %v1496, %v1501
        %v1503 = vrot.slane %v1383, 1
        %v1504 = vrot.slane %v1385, 2
        %v1505 = vor.u32 %v1503, %v1504
        %v1506 = vshrl.u32 %v1319, 16
        %v1508 = vrot.slane %v1506, 1
        %v1509 = vrot.slane %v1390, 2
        %v1510 = vor.u32 %v1508, %v1509
        %v1511 = vsel %vm442, %v1505, %v1510
        %v1512 = vrot.slane %v1395, 1
        %v1513 = vrot.slane %v1397, 2
        %v1514 = vor.u32 %v1512, %v1513
        %v1515 = vshrl.u32 %v1320, 16
        %v1517 = vrot.slane %v1515, 1
        %v1518 = vrot.slane %v1402, 2
        %v1519 = vor.u32 %v1517, %v1518
        %v1520 = vsel %vm442, %v1514, %v1519
        %v1521 = vrot.slane %v1407, 1
        %v1522 = vrot.slane %v1409, 2
        %v1523 = vor.u32 %v1521, %v1522
        %v1524 = vshrl.u32 %v1321, 16
        %v1526 = vrot.slane %v1524, 1
        %v1527 = vrot.slane %v1414, 2
        %v1528 = vor.u32 %v1526, %v1527
        %v1529 = vsel %vm442, %v1523, %v1528
        %1530 = vrot.lane.b32.xlu0 %v1466, 64
        %v1531 = vpop.permute.xlu0 %1530
        %1532 = vrot.lane.b32.xlu0 %v1475, 64
        %v1533 = vpop.permute.xlu0 %1532
        %1534 = vrot.lane.b32.xlu0 %v1484, 64
        %v1535 = vpop.permute.xlu0 %1534
        %1536 = vrot.lane.b32.xlu0 %v1493, 64
        %v1537 = vpop.permute.xlu0 %1536
        %1538 = vrot.lane.b32.xlu0 %v1502, 64
        %v1539 = vpop.permute.xlu0 %1538
        %1540 = vrot.lane.b32.xlu0 %v1511, 64
        %v1541 = vpop.permute.xlu0 %1540
        %1542 = vrot.lane.b32.xlu0 %v1520, 64
        %v1543 = vpop.permute.xlu0 %1542
        %1544 = vrot.lane.b32.xlu0 %v1529, 64
        %v1545 = vpop.permute.xlu0 %1544
        %v1546 = vrot.slane %v1290, 2
        %v1547 = vrot.slane %v1314, 2
        %v1548 = vsel %vm531, %v1546, %v1547
        %v1549 = vrot.slane %v1291, 2
        %v1550 = vrot.slane %v1315, 2
        %v1551 = vsel %vm531, %v1549, %v1550
        %v1552 = vrot.slane %v1292, 2
        %v1553 = vrot.slane %v1316, 2
        %v1554 = vsel %vm531, %v1552, %v1553
        %v1555 = vrot.slane %v1293, 2
        %v1556 = vrot.slane %v1317, 2
        %v1557 = vsel %vm531, %v1555, %v1556
        %v1558 = vrot.slane %v1294, 2
        %v1559 = vrot.slane %v1318, 2
        %v1560 = vsel %vm531, %v1558, %v1559
        %v1561 = vrot.slane %v1295, 2
        %v1562 = vrot.slane %v1319, 2
        %v1563 = vsel %vm531, %v1561, %v1562
        %v1564 = vrot.slane %v1296, 2
        %v1565 = vrot.slane %v1320, 2
        %v1566 = vsel %vm531, %v1564, %v1565
        %v1567 = vrot.slane %v1297, 2
        %v1568 = vrot.slane %v1321, 2
        %v1569 = vsel %vm531, %v1567, %v1568
        %v1571 = vsel %vm556, %v1290, %v1419
        %v1574 = vsel %vm556, %v1291, %v1421
        %v1577 = vsel %vm556, %v1292, %v1423
        %v1580 = vsel %vm556, %v1293, %v1425
        %v1583 = vsel %vm556, %v1294, %v1427
        %v1586 = vsel %vm556, %v1295, %v1429
        %v1589 = vsel %vm556, %v1296, %v1431
        %v1592 = vsel %vm556, %v1297, %v1433
        %v1596 = vsel %vm556, %v1436, %v1531
        %v1600 = vsel %vm556, %v1439, %v1533
        %v1604 = vsel %vm556, %v1442, %v1535
        %v1608 = vsel %vm556, %v1445, %v1537
        %v1612 = vsel %vm556, %v1448, %v1539
        %v1616 = vsel %vm556, %v1451, %v1541
        %v1620 = vsel %vm556, %v1454, %v1543
        %v1624 = vsel %vm556, %v1457, %v1545
        %v1627 = vsel %vm556, %v1548, 0
        %v1630 = vsel %vm556, %v1551, 0
        %v1633 = vsel %vm556, %v1554, 0
        %v1636 = vsel %vm556, %v1557, 0
        %v1639 = vsel %vm556, %v1560, 0
        %v1642 = vsel %vm556, %v1563, 0
        %v1645 = vsel %vm556, %v1566, 0
        %v1648 = vsel %vm556, %v1569, 0
        %1650 = vmatprep.subr.bf16.mxu0 %v745
        %1651 = vmatpush1.bf16.msra.mxu0 %v744
        %1652 = vmatprep.subr.bf16.mxu0 %v747
        %1653 = vmatpush1.bf16.msra.mxu0 %v746
        %1654 = vmatprep.subr.bf16.mxu0 %v749
        %1655 = vmatpush1.bf16.msra.mxu0 %v748
        %1656 = vmatprep.subr.bf16.mxu0 %v751
        %1657 = vmatpush1.bf16.msra.mxu0 %v750
        %1658 = vmatprep.subr.bf16.mxu0 %v753
        %1659 = vmatpush1.bf16.msra.mxu0 %v752
        %1660 = vmatprep.subr.bf16.mxu0 %v755
        %1661 = vmatpush1.bf16.msra.mxu0 %v754
        %1662 = vmatprep.subr.bf16.mxu0 %v757
        %1663 = vmatpush1.bf16.msra.mxu0 %v756
        %1664 = vmatprep.subr.bf16.mxu0 %v759
        %1665 = vmatpush1.bf16.msra.mxu0 %v758
        %1666 = vmatprep.subr.bf16.mxu0 %v761
        %1667 = vmatpush1.bf16.msra.mxu0 %v760
        %1668 = vmatprep.subr.bf16.mxu0 %v763
        %1669 = vmatpush1.bf16.msra.mxu0 %v762
        %1670 = vmatprep.subr.bf16.mxu0 %v765
        %1671 = vmatpush1.bf16.msra.mxu0 %v764
        %1672 = vmatprep.subr.bf16.mxu0 %v767
        %1673 = vmatpush1.bf16.msra.mxu0 %v766
        %1674 = vmatprep.subr.bf16.mxu0 %v769
        %1675 = vmatpush1.bf16.msra.mxu0 %v768
        %1676 = vmatprep.subr.bf16.mxu0 %v771
        %1677 = vmatpush1.bf16.msra.mxu0 %v770
        %1678 = vmatprep.subr.bf16.mxu0 %v773
        %1679 = vmatpush1.bf16.msra.mxu0 %v772
        %1680 = vmatprep.subr.bf16.mxu0 %v775
        %1681 = vmatpush1.bf16.msra.mxu0 %v774
        %1682 = vmatprep.mubr.bf16.mxu0 %v1596
        %1683 = vmatmul.mubr.bf16.gmra.mrb[0].mxu0 %v1571
        %v1684 = vpop.f32.mrb[0].mxu0
        %v1685 = vadd.f32 %v617, %v1684
        %v1686 = vpop.f32.mrb[0].mxu0
        %v1687 = vadd.f32 %v621, %v1686
        %v1688 = vpop.f32.mrb[0].mxu0
        %v1689 = vadd.f32 %v617, %v1688
        %v1690 = vpop.f32.mrb[0].mxu0
        %v1691 = vadd.f32 %v621, %v1690
        %1692 = vmatprep.mubr.bf16.mxu0 %v1600
        %1693 = vmatmul.mubr.bf16.gmra.mrb[0].mxu0 %v1574
        %v1694 = vpop.f32.mrb[0].mxu0
        %v1695 = vadd.f32 %v617, %v1694
        %v1696 = vpop.f32.mrb[0].mxu0
        %v1697 = vadd.f32 %v621, %v1696
        %v1698 = vpop.f32.mrb[0].mxu0
        %v1699 = vadd.f32 %v617, %v1698
        %v1700 = vpop.f32.mrb[0].mxu0
        %v1701 = vadd.f32 %v621, %v1700
        %1702 = vmatprep.mubr.bf16.mxu0 %v1604
        %1703 = vmatmul.mubr.bf16.gmra.mrb[0].mxu0 %v1577
        %v1704 = vpop.f32.mrb[0].mxu0
        %v1705 = vadd.f32 %v617, %v1704
        %v1706 = vpop.f32.mrb[0].mxu0
        %v1707 = vadd.f32 %v621, %v1706
        %v1708 = vpop.f32.mrb[0].mxu0
        %v1709 = vadd.f32 %v617, %v1708
        %v1710 = vpop.f32.mrb[0].mxu0
        %v1711 = vadd.f32 %v621, %v1710
        %1712 = vmatprep.mubr.bf16.mxu0 %v1608
        %1713 = vmatmul.mubr.bf16.gmra.mrb[0].mxu0 %v1580
        %v1714 = vpop.f32.mrb[0].mxu0
        %v1715 = vadd.f32 %v617, %v1714
        %v1716 = vpop.f32.mrb[0].mxu0
        %v1717 = vadd.f32 %v621, %v1716
        %v1718 = vpop.f32.mrb[0].mxu0
        %v1719 = vadd.f32 %v617, %v1718
        %v1720 = vpop.f32.mrb[0].mxu0
        %v1721 = vadd.f32 %v621, %v1720
        %1722 = vmatprep.mubr.bf16.mxu0 %v1612
        %1723 = vmatmul.mubr.bf16.gmra.mrb[0].mxu0 %v1583
        %v1724 = vpop.f32.mrb[0].mxu0
        %v1725 = vadd.f32 %v617, %v1724
        %v1726 = vpop.f32.mrb[0].mxu0
        %v1727 = vadd.f32 %v621, %v1726
        %v1728 = vpop.f32.mrb[0].mxu0
        %v1729 = vadd.f32 %v617, %v1728
        %v1730 = vpop.f32.mrb[0].mxu0
        %v1731 = vadd.f32 %v621, %v1730
        %1732 = vmatprep.mubr.bf16.mxu0 %v1616
        %1733 = vmatmul.mubr.bf16.gmra.mrb[0].mxu0 %v1586
        %v1734 = vpop.f32.mrb[0].mxu0
        %v1735 = vadd.f32 %v617, %v1734
        %v1736 = vpop.f32.mrb[0].mxu0
        %v1737 = vadd.f32 %v621, %v1736
        %v1738 = vpop.f32.mrb[0].mxu0
        %v1739 = vadd.f32 %v617, %v1738
        %v1740 = vpop.f32.mrb[0].mxu0
        %v1741 = vadd.f32 %v621, %v1740
        %1742 = vmatprep.mubr.bf16.mxu0 %v1620
        %1743 = vmatmul.mubr.bf16.gmra.mrb[0].mxu0 %v1589
        %v1744 = vpop.f32.mrb[0].mxu0
        %v1745 = vadd.f32 %v617, %v1744
        %v1746 = vpop.f32.mrb[0].mxu0
        %v1747 = vadd.f32 %v621, %v1746
        %v1748 = vpop.f32.mrb[0].mxu0
        %v1749 = vadd.f32 %v617, %v1748
        %v1750 = vpop.f32.mrb[0].mxu0
        %v1751 = vadd.f32 %v621, %v1750
        %1752 = vmatprep.mubr.bf16.mxu0 %v1624
        %1753 = vmatmul.mubr.bf16.gmra.mrb[0].mxu0 %v1592
        %v1754 = vpop.f32.mrb[0].mxu0
        %v1755 = vadd.f32 %v617, %v1754
        %v1756 = vpop.f32.mrb[0].mxu0
        %v1757 = vadd.f32 %v621, %v1756
        %v1758 = vpop.f32.mrb[0].mxu0
        %v1759 = vadd.f32 %v617, %v1758
        %v1760 = vpop.f32.mrb[0].mxu0
        %v1761 = vadd.f32 %v621, %v1760
        %1762 = vdwg.mxu0
        %1763 = vmatprep.subr.bf16.mxu0 %v777
        %1764 = vmatpush1.bf16.msra.mxu0 %v776
        %1765 = vmatprep.subr.bf16.mxu0 %v779
        %1766 = vmatpush1.bf16.msra.mxu0 %v778
        %1767 = vmatprep.subr.bf16.mxu0 %v781
        %1768 = vmatpush1.bf16.msra.mxu0 %v780
        %1769 = vmatprep.subr.bf16.mxu0 %v783
        %1770 = vmatpush1.bf16.msra.mxu0 %v782
        %1771 = vmatprep.subr.bf16.mxu0 0
        %1772 = vmatpush1.bf16.msra.mxu0 0
        %1773 = vmatprep.subr.bf16.mxu0 0
        %1774 = vmatpush1.bf16.msra.mxu0 0
        %1775 = vmatprep.subr.bf16.mxu0 0
        %1776 = vmatpush1.bf16.msra.mxu0 0
        %1777 = vmatprep.subr.bf16.mxu0 0
        %1778 = vmatpush1.bf16.msra.mxu0 0
        %1779 = vmatprep.subr.bf16.mxu0 0
        %1780 = vmatpush1.bf16.msra.mxu0 0
        %1781 = vmatprep.subr.bf16.mxu0 0
        %1782 = vmatpush1.bf16.msra.mxu0 0
        %1783 = vmatprep.subr.bf16.mxu0 0
        %1784 = vmatpush1.bf16.msra.mxu0 0
        %1785 = vmatprep.subr.bf16.mxu0 0
        %1786 = vmatpush1.bf16.msra.mxu0 0
        %1787 = vmatprep.subr.bf16.mxu0 0
        %1788 = vmatpush1.bf16.msra.mxu0 0
        %1789 = vmatprep.subr.bf16.mxu0 0
        %1790 = vmatpush1.bf16.msra.mxu0 0
        %1791 = vmatprep.subr.bf16.mxu0 0
        %1792 = vmatpush1.bf16.msra.mxu0 0
        %1793 = vmatprep.subr.bf16.mxu0 0
        %1794 = vmatpush1.bf16.msra.mxu0 0
        %1795 = vmatprep.mubr.bf16.mxu0 0
        %1796 = vmatmul.mubr.bf16.gmra.mrb[0].mxu0 %v1627
        %v1797 = vpop.f32.mrb[0].mxu0
        %v1798 = vadd.f32 %v1685, %v1797
        %v1799 = vpop.f32.mrb[0].mxu0
        %v1800 = vadd.f32 %v1687, %v1799
        %v1801 = vpop.f32.mrb[0].mxu0
        %v1802 = vadd.f32 %v1689, %v1801
        %v1803 = vpop.f32.mrb[0].mxu0
        %v1804 = vadd.f32 %v1691, %v1803
        %1805 = vmatprep.mubr.bf16.mxu0 0
        %1806 = vmatmul.mubr.bf16.gmra.mrb[0].mxu0 %v1630
        %v1807 = vpop.f32.mrb[0].mxu0
        %v1808 = vadd.f32 %v1695, %v1807
        %v1809 = vpop.f32.mrb[0].mxu0
        %v1810 = vadd.f32 %v1697, %v1809
        %v1811 = vpop.f32.mrb[0].mxu0
        %v1812 = vadd.f32 %v1699, %v1811
        %v1813 = vpop.f32.mrb[0].mxu0
        %v1814 = vadd.f32 %v1701, %v1813
        %1815 = vmatprep.mubr.bf16.mxu0 0
        %1816 = vmatmul.mubr.bf16.gmra.mrb[0].mxu0 %v1633
        %v1817 = vpop.f32.mrb[0].mxu0
        %v1818 = vadd.f32 %v1705, %v1817
        %v1819 = vpop.f32.mrb[0].mxu0
        %v1820 = vadd.f32 %v1707, %v1819
        %v1821 = vpop.f32.mrb[0].mxu0
        %v1822 = vadd.f32 %v1709, %v1821
        %v1823 = vpop.f32.mrb[0].mxu0
        %v1824 = vadd.f32 %v1711, %v1823
        %1825 = vmatprep.mubr.bf16.mxu0 0
        %1826 = vmatmul.mubr.bf16.gmra.mrb[0].mxu0 %v1636
        %v1827 = vpop.f32.mrb[0].mxu0
        %v1828 = vadd.f32 %v1715, %v1827
        %v1829 = vpop.f32.mrb[0].mxu0
        %v1830 = vadd.f32 %v1717, %v1829
        %v1831 = vpop.f32.mrb[0].mxu0
        %v1832 = vadd.f32 %v1719, %v1831
        %v1833 = vpop.f32.mrb[0].mxu0
        %v1834 = vadd.f32 %v1721, %v1833
        %1835 = vmatprep.mubr.bf16.mxu0 0
        %1836 = vmatmul.mubr.bf16.gmra.mrb[0].mxu0 %v1639
        %v1837 = vpop.f32.mrb[0].mxu0
        %v1838 = vadd.f32 %v1725, %v1837
        %v1839 = vpop.f32.mrb[0].mxu0
        %v1840 = vadd.f32 %v1727, %v1839
        %v1841 = vpop.f32.mrb[0].mxu0
        %v1842 = vadd.f32 %v1729, %v1841
        %v1843 = vpop.f32.mrb[0].mxu0
        %v1844 = vadd.f32 %v1731, %v1843
        %1845 = vmatprep.mubr.bf16.mxu0 0
        %1846 = vmatmul.mubr.bf16.gmra.mrb[0].mxu0 %v1642
        %v1847 = vpop.f32.mrb[0].mxu0
        %v1848 = vadd.f32 %v1735, %v1847
        %v1849 = vpop.f32.mrb[0].mxu0
        %v1850 = vadd.f32 %v1737, %v1849
        %v1851 = vpop.f32.mrb[0].mxu0
        %v1852 = vadd.f32 %v1739, %v1851
        %v1853 = vpop.f32.mrb[0].mxu0
        %v1854 = vadd.f32 %v1741, %v1853
        %1855 = vmatprep.mubr.bf16.mxu0 0
        %1856 = vmatmul.mubr.bf16.gmra.mrb[0].mxu0 %v1645
        %v1857 = vpop.f32.mrb[0].mxu0
        %v1858 = vadd.f32 %v1745, %v1857
        %v1859 = vpop.f32.mrb[0].mxu0
        %v1860 = vadd.f32 %v1747, %v1859
        %v1861 = vpop.f32.mrb[0].mxu0
        %v1862 = vadd.f32 %v1749, %v1861
        %v1863 = vpop.f32.mrb[0].mxu0
        %v1864 = vadd.f32 %v1751, %v1863
        %1865 = vmatprep.mubr.bf16.mxu0 0
        %1866 = vmatmul.mubr.bf16.gmra.mrb[0].mxu0 %v1648
        %v1867 = vpop.f32.mrb[0].mxu0
        %v1868 = vadd.f32 %v1755, %v1867
        %v1869 = vpop.f32.mrb[0].mxu0
        %v1870 = vadd.f32 %v1757, %v1869
        %v1871 = vpop.f32.mrb[0].mxu0
        %v1872 = vadd.f32 %v1759, %v1871
        %v1873 = vpop.f32.mrb[0].mxu0
        %v1874 = vadd.f32 %v1761, %v1873
        %1875 = vdwg.mxu0
        %v1876 = vmax.f32 %v1798, 0.0
        %v1877 = vmax.f32 %v1800, 0.0
        %v1878 = vmax.f32 %v1802, 0.0
        %v1879 = vmax.f32 %v1804, 0.0
        %v1880 = vmax.f32 %v1808, 0.0
        %v1881 = vmax.f32 %v1810, 0.0
        %v1882 = vmax.f32 %v1812, 0.0
        %v1883 = vmax.f32 %v1814, 0.0
        %v1884 = vmax.f32 %v1818, 0.0
        %v1885 = vmax.f32 %v1820, 0.0
        %v1886 = vmax.f32 %v1822, 0.0
        %v1887 = vmax.f32 %v1824, 0.0
        %v1888 = vmax.f32 %v1828, 0.0
        %v1889 = vmax.f32 %v1830, 0.0
        %v1890 = vmax.f32 %v1832, 0.0
        %v1891 = vmax.f32 %v1834, 0.0
        %v1892 = vmax.f32 %v1838, 0.0
        %v1893 = vmax.f32 %v1840, 0.0
        %v1894 = vmax.f32 %v1842, 0.0
        %v1895 = vmax.f32 %v1844, 0.0
        %v1896 = vmax.f32 %v1848, 0.0
        %v1897 = vmax.f32 %v1850, 0.0
        %v1898 = vmax.f32 %v1852, 0.0
        %v1899 = vmax.f32 %v1854, 0.0
        %v1900 = vmax.f32 %v1858, 0.0
        %v1901 = vmax.f32 %v1860, 0.0
        %v1902 = vmax.f32 %v1862, 0.0
        %v1903 = vmax.f32 %v1864, 0.0
        %v1904 = vmax.f32 %v1868, 0.0
        %v1905 = vmax.f32 %v1870, 0.0
        %v1906 = vmax.f32 %v1872, 0.0
        %v1907 = vmax.f32 %v1874, 0.0
        %v1908 = vmax.f32 %v1876, %v1878
        %v1909 = vrot.slane %v1908, 4
        %v1910 = vmax.f32 %v1908, %v1909
        %v1911 = vrot.slane %v1910, 2
        %v1912 = vmax.f32 %v1910, %v1911
        %v1913 = vrot.slane %v1912, 1
        %v1914 = vmax.f32 %v1912, %v1913
        %v1915 = vmax.f32 %v1877, %v1879
        %v1916 = vrot.slane %v1915, 4
        %v1917 = vmax.f32 %v1915, %v1916
        %v1918 = vrot.slane %v1917, 2
        %v1919 = vmax.f32 %v1917, %v1918
        %v1920 = vrot.slane %v1919, 1
        %v1921 = vmax.f32 %v1919, %v1920
        %v1922 = vmax.f32 %v1880, %v1882
        %v1923 = vrot.slane %v1922, 4
        %v1924 = vmax.f32 %v1922, %v1923
        %v1925 = vrot.slane %v1924, 2
        %v1926 = vmax.f32 %v1924, %v1925
        %v1927 = vrot.slane %v1926, 1
        %v1928 = vmax.f32 %v1926, %v1927
        %v1929 = vmax.f32 %v1881, %v1883
        %v1930 = vrot.slane %v1929, 4
        %v1931 = vmax.f32 %v1929, %v1930
        %v1932 = vrot.slane %v1931, 2
        %v1933 = vmax.f32 %v1931, %v1932
        %v1934 = vrot.slane %v1933, 1
        %v1935 = vmax.f32 %v1933, %v1934
        %v1936 = vmax.f32 %v1884, %v1886
        %v1937 = vrot.slane %v1936, 4
        %v1938 = vmax.f32 %v1936, %v1937
        %v1939 = vrot.slane %v1938, 2
        %v1940 = vmax.f32 %v1938, %v1939
        %v1941 = vrot.slane %v1940, 1
        %v1942 = vmax.f32 %v1940, %v1941
        %v1943 = vmax.f32 %v1885, %v1887
        %v1944 = vrot.slane %v1943, 4
        %v1945 = vmax.f32 %v1943, %v1944
        %v1946 = vrot.slane %v1945, 2
        %v1947 = vmax.f32 %v1945, %v1946
        %v1948 = vrot.slane %v1947, 1
        %v1949 = vmax.f32 %v1947, %v1948
        %v1950 = vmax.f32 %v1888, %v1890
        %v1951 = vrot.slane %v1950, 4
        %v1952 = vmax.f32 %v1950, %v1951
        %v1953 = vrot.slane %v1952, 2
        %v1954 = vmax.f32 %v1952, %v1953
        %v1955 = vrot.slane %v1954, 1
        %v1956 = vmax.f32 %v1954, %v1955
        %v1957 = vmax.f32 %v1889, %v1891
        %v1958 = vrot.slane %v1957, 4
        %v1959 = vmax.f32 %v1957, %v1958
        %v1960 = vrot.slane %v1959, 2
        %v1961 = vmax.f32 %v1959, %v1960
        %v1962 = vrot.slane %v1961, 1
        %v1963 = vmax.f32 %v1961, %v1962
        %v1964 = vmax.f32 %v1892, %v1894
        %v1965 = vrot.slane %v1964, 4
        %v1966 = vmax.f32 %v1964, %v1965
        %v1967 = vrot.slane %v1966, 2
        %v1968 = vmax.f32 %v1966, %v1967
        %v1969 = vrot.slane %v1968, 1
        %v1970 = vmax.f32 %v1968, %v1969
        %v1971 = vmax.f32 %v1893, %v1895
        %v1972 = vrot.slane %v1971, 4
        %v1973 = vmax.f32 %v1971, %v1972
        %v1974 = vrot.slane %v1973, 2
        %v1975 = vmax.f32 %v1973, %v1974
        %v1976 = vrot.slane %v1975, 1
        %v1977 = vmax.f32 %v1975, %v1976
        %v1978 = vmax.f32 %v1896, %v1898
        %v1979 = vrot.slane %v1978, 4
        %v1980 = vmax.f32 %v1978, %v1979
        %v1981 = vrot.slane %v1980, 2
        %v1982 = vmax.f32 %v1980, %v1981
        %v1983 = vrot.slane %v1982, 1
        %v1984 = vmax.f32 %v1982, %v1983
        %v1985 = vmax.f32 %v1897, %v1899
        %v1986 = vrot.slane %v1985, 4
        %v1987 = vmax.f32 %v1985, %v1986
        %v1988 = vrot.slane %v1987, 2
        %v1989 = vmax.f32 %v1987, %v1988
        %v1990 = vrot.slane %v1989, 1
        %v1991 = vmax.f32 %v1989, %v1990
        %v1992 = vmax.f32 %v1900, %v1902
        %v1993 = vrot.slane %v1992, 4
        %v1994 = vmax.f32 %v1992, %v1993
        %v1995 = vrot.slane %v1994, 2
        %v1996 = vmax.f32 %v1994, %v1995
        %v1997 = vrot.slane %v1996, 1
        %v1998 = vmax.f32 %v1996, %v1997
        %v1999 = vmax.f32 %v1901, %v1903
        %v2000 = vrot.slane %v1999, 4
        %v2001 = vmax.f32 %v1999, %v2000
        %v2002 = vrot.slane %v2001, 2
        %v2003 = vmax.f32 %v2001, %v2002
        %v2004 = vrot.slane %v2003, 1
        %v2005 = vmax.f32 %v2003, %v2004
        %v2006 = vmax.f32 %v1904, %v1906
        %v2007 = vrot.slane %v2006, 4
        %v2008 = vmax.f32 %v2006, %v2007
        %v2009 = vrot.slane %v2008, 2
        %v2010 = vmax.f32 %v2008, %v2009
        %v2011 = vrot.slane %v2010, 1
        %v2012 = vmax.f32 %v2010, %v2011
        %v2013 = vmax.f32 %v1905, %v1907
        %v2014 = vrot.slane %v2013, 4
        %v2015 = vmax.f32 %v2013, %v2014
        %v2016 = vrot.slane %v2015, 2
        %v2017 = vmax.f32 %v2015, %v2016
        %v2018 = vrot.slane %v2017, 1
        %v2019 = vmax.f32 %v2017, %v2018
        %v2020 = vmax.f32 %v1218, %v1914
        %v2021 = vmax.f32 %v1219, %v1921
        %v2022 = vmax.f32 %v1220, %v1928
        %v2023 = vmax.f32 %v1221, %v1935
        %v2024 = vmax.f32 %v1222, %v1942
        %v2025 = vmax.f32 %v1223, %v1949
        %v2026 = vmax.f32 %v1224, %v1956
        %v2027 = vmax.f32 %v1225, %v1963
        %v2028 = vmax.f32 %v1226, %v1970
        %v2029 = vmax.f32 %v1227, %v1977
        %v2030 = vmax.f32 %v1228, %v1984
        %v2031 = vmax.f32 %v1229, %v1991
        %v2032 = vmax.f32 %v1230, %v1998
        %v2033 = vmax.f32 %v1231, %v2005
        %v2034 = vmax.f32 %v1232, %v2012
        %v2035 = vmax.f32 %v1233, %v2019
        %vm2052 = vcmask 1041409
        %v2053 = vsel %vm2052, %v2022, %v2020
        %vm2054 = vcmask 1042434
        %v2055 = vsel %vm2054, %v2024, %v2053
        %vm2056 = vcmask 1043459
        %v2057 = vsel %vm2056, %v2026, %v2055
        %vm2058 = vcmask 1044484
        %v2059 = vsel %vm2058, %v2028, %v2057
        %vm2060 = vcmask 1045509
        %v2061 = vsel %vm2060, %v2030, %v2059
        %vm2062 = vcmask 1046534
        %v2063 = vsel %vm2062, %v2032, %v2061
        %vm2064 = vcmask 1047559
        %v2065 = vsel %vm2064, %v2034, %v2063
        %v2066 = vsel %vm2052, %v2023, %v2021
        %v2067 = vsel %vm2054, %v2025, %v2066
        %v2068 = vsel %vm2056, %v2027, %v2067
        %v2069 = vsel %vm2058, %v2029, %v2068
        %v2070 = vsel %vm2060, %v2031, %v2069
        %v2071 = vsel %vm2062, %v2033, %v2070
        %v2072 = vsel %vm2064, %v2035, %v2071
        %2075 = vst [vmem:[%s166] sm:$0xff] %v2065
        %2076 = vst [vmem:[%s166 + $0x8] sm:$0xff] %v2072
        %s2077 = sand.u32 %s93, 1
        %s2078 = scalar_lea.sflag [#allocation3], %s2077
        %s2079 = sand.u32 %s93, 1
        %s2080 = smul.addr %s2079, 16
        %s2081 = scalar_lea.vmem [#allocation2], %s2080
        // Predicated region
        $region33: #{tpu_custom_call.1} parent=31 // pred_check
          %p2082 = pneg %p103
        $region34: #{tpu_custom_call.1} parent=31 // pred_check_branch
          %2084 = sbr.rel (%p2082) target = $region36
        $region35: #{tpu_custom_call.1} parent=31 // pred_region
          %s2086 = ssub.s32 256, 256
          %2087 = vsyncadd %s2078, %s2086
          %s2088 = smul.addr %s17, 2
          %s2089 = smul.addr %s2088, 128
          %s2090 = scalar_lea.hbm %s3, %s2089
          %s2092 = sshll.u32 %s2081, 4
          %s2093 = int_to_ptr.vmem [resolvable:$true] %s2092
          %2095 = dma.vmem_to_hbm [thread:$0]  %s2093, 256, %s2090, %s2078
        $region36: #{tpu_custom_call.1} parent=31 // pred_fallthru
          _
      $region32: #{tpu_custom_call.1} parent=5 // pred_fallthru
        _
      %p2096 = scmp.le.s32.totalorder 2, %s12
      // Predicated region
      $region37: #{tpu_custom_call.1} parent=5 // pred_check
        %p2097 = pneg %p2096
      $region38: #{tpu_custom_call.1} parent=5 // pred_check_branch
        %2099 = sbr.rel (%p2097) target = $region40
      $region39: #{tpu_custom_call.1} parent=5 // pred_region
        %s2100 = ssub.s32 %s12, 2
        // Predicated region
        $region41: #{tpu_custom_call.1} parent=39 // pred_check
          %p2101 = pneg %p109
        $region42: #{tpu_custom_call.1} parent=39 // pred_check_branch
          %2103 = sbr.rel (%p2101) target = $region44
        $region43: #{tpu_custom_call.1} parent=39 // pred_region
          %s2104 = sand.u32 %s94, 1
          %s2105 = scalar_lea.sflag [#allocation3], %s2104
          %s2106 = sand.u32 %s94, 1
          %s2107 = smul.addr %s2106, 16
          %s2108 = scalar_lea.vmem [#allocation2], %s2107
          %2109 = dma.done %s2105, 256
        $region44: #{tpu_custom_call.1} parent=39 // pred_fallthru
          _
      $region40: #{tpu_custom_call.1} parent=5 // pred_fallthru
        _
    $region6: #{tpu_custom_call.1} parent=1 // loop_footer
      %s16 = sadd.s32 1, %s12
    $region7: #{tpu_custom_call.1} parent=1 // loop_footer_branch
      %11 = sbr.rel target = $region3
    $region8: #{tpu_custom_call.1} parent=1 // loop_exit
      _
    %2110 = vsyncpa [#allocation3], 1
    %s2111 = scalar_lea.sflag [#allocation3], 1
    %2112 = vsyncpa %s2111, 1

</llo_original>
